<compile_context>
chip_gen: v7x
topology: tpu7x:2x2x1
jax: 0.10.0
libtpu: 0.0.40
codegen_flags: <defaults>
</compile_context>

<pallas_src>
import math
import functools

import jax
import jax.numpy as jnp
from jax import lax
from jax.experimental import pallas as pl
from jax.experimental.pallas import tpu as pltpu


# Safe on all of v5e/v6e (128 MiB physical VMEM) and v7x (64 MiB physical).
_VMEM_LIMIT = 48 * 1024 * 1024

_TRANS_B_DIMS = (((1,), (1,)), ((), ()))   # contract last dims (no K transpose)
_NN_DIMS = (((1,), (0,)), ((), ()))        # ordinary row-major matmul


def _choose_tile(dim, target, align):
    """Largest divisor of `dim` that is <= target and a multiple of `align`;
    falls back to the full dim if none exists."""
    t = min(target, dim)
    t -= t % align
    while t >= align:
        if dim % t == 0:
            return t
        t -= align
    return dim


# ---------------------------------------------------------------------------
# Tiled linear kernel: y = x @ w + b with an f32 VMEM accumulator.
# ---------------------------------------------------------------------------
def _linear_kernel(x_ref, w_ref, b_ref, o_ref, acc_ref):
    k = pl.program_id(2)

    @pl.when(k == 0)
    def _():
        acc_ref[...] = jnp.zeros(acc_ref.shape, jnp.float32)

    # Operands stay in their input dtype (bf16 stays bf16); accumulate in f32.
    acc_ref[...] += jnp.dot(x_ref[...], w_ref[...],
                            preferred_element_type=jnp.float32)

    @pl.when(k == pl.num_programs(2) - 1)
    def _():
        o_ref[...] = (acc_ref[...] + b_ref[...].astype(jnp.float32)
                      ).astype(o_ref.dtype)


def linear(x2d, w, b, *, block_m=512, block_n=512, block_k=512):
    """x2d: (N, Din), w: (Din, Dout), b: (Dout,) -> (N, Dout)."""
    N, Din = x2d.shape
    Dout = w.shape[1]
    tm = _choose_tile(N, block_m, 8)
    tn = _choose_tile(Dout, block_n, 128)
    tk = _choose_tile(Din, block_k, 128)
    grid = (N // tm, Dout // tn, Din // tk)
    return pl.pallas_call(
        _linear_kernel,
        out_shape=jax.ShapeDtypeStruct((N, Dout), x2d.dtype),
        grid_spec=pltpu.PrefetchScalarGridSpec(
            num_scalar_prefetch=0,
            grid=grid,
            in_specs=[
                pl.BlockSpec((tm, tk), lambda i, j, k: (i, k)),
                pl.BlockSpec((tk, tn), lambda i, j, k: (k, j)),
                pl.BlockSpec((1, tn), lambda i, j, k: (0, j)),
            ],
            out_specs=pl.BlockSpec((tm, tn), lambda i, j, k: (i, j)),
            scratch_shapes=[pltpu.VMEM((tm, tn), jnp.float32)],
        ),
        compiler_params=pltpu.CompilerParams(
            dimension_semantics=("parallel", "parallel", "arbitrary"),
            vmem_limit_bytes=_VMEM_LIMIT),
    )(x2d, w, b.reshape(1, Dout))


# ---------------------------------------------------------------------------
# Fast path: flash GQA reading straight out of the fused QKV projection.
#   qkv: (B*S, H + 2*kv_dim), rows are (b, s) pairs.
#   Q block  (tq, G*d)  = the G query heads sharing one kv head (contiguous
#                          columns [g*G*d : (g+1)*G*d]).
#   K/V block (tk, d)   = one kv head's columns inside the K / V regions.
#   Output is written in the (B*S, H) layout the output projection consumes.
# Requires d % 128 == 0 (lane-dense blocks) and S % 8 == 0.
# ---------------------------------------------------------------------------
def _gqa_flash_kernel_packed(q_ref, k_ref, v_ref, o_ref, m_sc, l_sc, acc_sc,
                             *, G, d):
    ki = pl.program_id(3)

    @pl.when(ki == 0)
    def _():
        m_sc[...] = jnp.full(m_sc.shape, -jnp.inf, jnp.float32)
        l_sc[...] = jnp.zeros(l_sc.shape, jnp.float32)
        acc_sc[...] = jnp.zeros(acc_sc.shape, jnp.float32)

    k = k_ref[...]                                   # (tk, d)
    v = v_ref[...]                                   # (tk, d)

    # Static unroll over the G query heads that share this kv head; 1/sqrt(d)
    # is pre-folded into wq/bq so no per-step rescale is needed.
    # TODO(synk): split tk into two sub-tiles so sub-tile B's QK^T issues on
    # the MXU while sub-tile A's max/exp/sum run on XLU/EUP.
    for g2 in range(G):
        lo, hi = g2 * d, (g2 + 1) * d
        q_h = q_ref[:, lo:hi]                        # (tq, d), lane-aligned
        s = lax.dot_general(q_h, k, _TRANS_B_DIMS,
                            preferred_element_type=jnp.float32)   # (tq, tk)
        m_prev = m_sc[g2]                            # (tq, 1)
        m_new = jnp.maximum(m_prev, jnp.max(s, axis=-1, keepdims=True))
        alpha = jnp.exp(m_prev - m_new)
        p = jnp.exp(s - m_new)                       # f32, unnormalized
        l_sc[g2] = alpha * l_sc[g2] + jnp.sum(p, axis=-1, keepdims=True)
        pv = lax.dot_general(p.astype(v.dtype), v, _NN_DIMS,
                             preferred_element_type=jnp.float32)  # (tq, d)
        acc_sc[:, lo:hi] = alpha * acc_sc[:, lo:hi] + pv
        m_sc[g2] = m_new

    @pl.when(ki == pl.num_programs(3) - 1)
    def _():
        for g2 in range(G):
            lo, hi = g2 * d, (g2 + 1) * d
            inv_l = pl.reciprocal(l_sc[g2], approx=False)
            o_ref[:, lo:hi] = (acc_sc[:, lo:hi] * inv_l).astype(o_ref.dtype)


def gqa_attention_packed(qkv, *, B, S, H, num_group, num_kv_head, head_dim,
                         block_q=128, block_kv=256):
    G, d, Hkv = num_group, head_dim, num_kv_head
    tq = _choose_tile(S, block_q, 8)
    tk = _choose_tile(S, block_kv, 8)
    q_blocks = S // tq
    kv_blocks = S // tk
    kcol0 = Hkv * G            # column-block offset (units of d) of K in qkv
    vcol0 = Hkv * (G + 1)      # column-block offset (units of d) of V in qkv
    kernel = functools.partial(_gqa_flash_kernel_packed, G=G, d=d)
    grid = (B, Hkv, q_blocks, kv_blocks)
    return pl.pallas_call(
        kernel,
        out_shape=jax.ShapeDtypeStruct((B * S, H), qkv.dtype),
        grid_spec=pltpu.PrefetchScalarGridSpec(
            num_scalar_prefetch=0,
            grid=grid,
            in_specs=[
                pl.BlockSpec((tq, G * d),
                             lambda b, g, qi, ki: (b * q_blocks + qi, g)),
                pl.BlockSpec((tk, d),
                             lambda b, g, qi, ki: (b * kv_blocks + ki, kcol0 + g)),
                pl.BlockSpec((tk, d),
                             lambda b, g, qi, ki: (b * kv_blocks + ki, vcol0 + g)),
            ],
            out_specs=pl.BlockSpec((tq, G * d),
                                   lambda b, g, qi, ki: (b * q_blocks + qi, g)),
            scratch_shapes=[
                pltpu.VMEM((G, tq, 1), jnp.float32),      # running max m
                pltpu.VMEM((G, tq, 1), jnp.float32),      # running sum l
                pltpu.VMEM((tq, G * d), jnp.float32),     # output accumulator
            ],
        ),
        compiler_params=pltpu.CompilerParams(
            dimension_semantics=("parallel", "parallel", "parallel", "arbitrary"),
            vmem_limit_bytes=_VMEM_LIMIT),
    )(qkv, qkv, qkv)   # same buffer, three column windows — no HBM slicing


# ---------------------------------------------------------------------------
# Fallback path (head_dim not lane-aligned, e.g. toy shapes): rows of the Q
# block are (seq, group) pairs — q: (B, Hkv, S*G, d), k/v: (B, Hkv, S, d).
# ---------------------------------------------------------------------------
def _gqa_flash_kernel_rows(q_ref, k_ref, v_ref, o_ref, m_sc, l_sc, acc_sc):
    ki = pl.program_id(3)

    @pl.when(ki == 0)
    def _():
        m_sc[...] = jnp.full(m_sc.shape, -jnp.inf, jnp.float32)
        l_sc[...] = jnp.zeros(l_sc.shape, jnp.float32)
        acc_sc[...] = jnp.zeros(acc_sc.shape, jnp.float32)

    q = q_ref[0, 0]                    # (G*tq, d); 1/sqrt(d) folded into wq/bq
    k = k_ref[0, 0]                    # (tk, d)
    v = v_ref[0, 0]                    # (tk, d)

    s = lax.dot_general(q, k, _TRANS_B_DIMS,
                        preferred_element_type=jnp.float32)      # (G*tq, tk)
    m_prev = m_sc[...]
    m_new = jnp.maximum(m_prev, jnp.max(s, axis=-1, keepdims=True))
    alpha = jnp.exp(m_prev - m_new)
    p = jnp.exp(s - m_new)
    l_sc[...] = alpha * l_sc[...] + jnp.sum(p, axis=-1, keepdims=True)
    pv = lax.dot_general(p.astype(v.dtype), v, _NN_DIMS,
                         preferred_element_type=jnp.float32)      # (G*tq, d)
    acc_sc[...] = alpha * acc_sc[...] + pv
    m_sc[...] = m_new

    @pl.when(ki == pl.num_programs(3) - 1)
    def _():
        inv_l = pl.reciprocal(l_sc[...], approx=False)
        o_ref[0, 0] = (acc_sc[...] * inv_l).astype(o_ref.dtype)


def gqa_attention_rows(q, k, v, *, block_q=128, block_kv=256):
    B, Hkv, SG, d = q.shape
    S = k.shape[2]
    G = SG // S
    tq = _choose_tile(S, block_q, 8)
    tk = _choose_tile(S, block_kv, 8)
    grid = (B, Hkv, S // tq, S // tk)
    return pl.pallas_call(
        _gqa_flash_kernel_rows,
        out_shape=jax.ShapeDtypeStruct((B, Hkv, SG, d), q.dtype),
        grid_spec=pltpu.PrefetchScalarGridSpec(
            num_scalar_prefetch=0,
            grid=grid,
            in_specs=[
                pl.BlockSpec((1, 1, G * tq, d),
                             lambda b, g, qi, ki: (b, g, qi, 0)),
                pl.BlockSpec((1, 1, tk, d),
                             lambda b, g, qi, ki: (b, g, ki, 0)),
                pl.BlockSpec((1, 1, tk, d),
                             lambda b, g, qi, ki: (b, g, ki, 0)),
            ],
            out_specs=pl.BlockSpec((1, 1, G * tq, d),
                                   lambda b, g, qi, ki: (b, g, qi, 0)),
            scratch_shapes=[
                pltpu.VMEM((G * tq, 1), jnp.float32),
                pltpu.VMEM((G * tq, 1), jnp.float32),
                pltpu.VMEM((G * tq, d), jnp.float32),
            ],
        ),
        compiler_params=pltpu.CompilerParams(
            dimension_semantics=("parallel", "parallel", "parallel", "arbitrary"),
            vmem_limit_bytes=_VMEM_LIMIT),
    )(q, k, v)


# ---------------------------------------------------------------------------
# Weight prep (done ONCE, outside the jitted forward): fuse wq|wk|wv, fold
# 1/sqrt(head_dim) into wq/bq, optionally cast to a compute dtype (bf16).
# ---------------------------------------------------------------------------
def prepare_params(params, num_head, num_group, *, compute_dtype=None):
    hidden = params["wq"].shape[0]
    head_dim = hidden // num_head
    scale = 1.0 / math.sqrt(head_dim)
    w_qkv = jnp.concatenate([params["wq"] * scale, params["wk"], params["wv"]],
                            axis=1)
    b_qkv = jnp.concatenate([params["bq"] * scale, params["bk"], params["bv"]],
                            axis=0)
    wo, bo = params["wo"], params["bo"]
    if compute_dtype is not None:
        w_qkv = w_qkv.astype(compute_dtype)
        wo = wo.astype(compute_dtype)
    return {"w_qkv": w_qkv, "b_qkv": b_qkv, "wo": wo, "bo": bo}


# ---------------------------------------------------------------------------
# Full module forward.
# ---------------------------------------------------------------------------
def group_query_attn_forward(X, prepared, num_head, num_group,
                             *, block_q=128, block_kv=256,
                             lin_block_m=512, lin_block_n=512, lin_block_k=512,
                             compute_dtype=None):
    B, S, H = X.shape
    d = H // num_head
    Hkv = num_head // num_group
    kv_dim = Hkv * d
    G = num_group
    out_dtype = X.dtype

    x2d = X.reshape(B * S, H)
    if compute_dtype is not None:
        x2d = x2d.astype(compute_dtype)

    # Fused Q|K|V projection: one pass over X, weights pre-concatenated.
    qkv = linear(x2d, prepared["w_qkv"], prepared["b_qkv"],
                 block_m=lin_block_m, block_n=lin_block_n, block_k=lin_block_k)

    if (d % 128 == 0) and (S % 8 == 0):
        # Fast path: no host relayout at all — Q/K/V column windows of qkv and
        # the (B*S, H) output layout are expressed in BlockSpec index_maps.
        h2d = gqa_attention_packed(qkv, B=B, S=S, H=H, num_group=G,
                                   num_kv_head=Hkv, head_dim=d,
                                   block_q=block_q, block_kv=block_kv)
    else:
        # TODO(synk): for head_dim == 64, pack two kv heads per grid step so
        # the lane dim stays a multiple of 128 instead of taking this fallback.
        Q = qkv[:, :H]
        K = qkv[:, H:H + kv_dim]
        V = qkv[:, H + kv_dim:]
        Qg = (Q.reshape(B, S, Hkv, G, d)
               .transpose(0, 2, 1, 3, 4)
               .reshape(B, Hkv, S * G, d))
        Kg = K.reshape(B, S, Hkv, d).transpose(0, 2, 1, 3)
        Vg = V.reshape(B, S, Hkv, d).transpose(0, 2, 1, 3)
        Og = gqa_attention_rows(Qg, Kg, Vg, block_q=block_q, block_kv=block_kv)
        h2d = (Og.reshape(B, Hkv, S, G, d)
                 .transpose(0, 2, 1, 3, 4)
                 .reshape(B * S, H))

    out = linear(h2d, prepared["wo"], prepared["bo"],
                 block_m=lin_block_m, block_n=lin_block_n, block_k=lin_block_k)
    return out.reshape(B, S, H).astype(out_dtype)


# ---------------------------------------------------------------------------
# Pure-JAX reference (mirrors the PyTorch forward) for sanity checking.
# ---------------------------------------------------------------------------
def reference_forward(X, params, num_head, num_group):
    B, S, H = X.shape
    head_dim = H // num_head
    num_kv_head = num_head // num_group
    prec = lax.Precision.HIGHEST
    Q = jnp.einsum("bsh,hd->bsd", X, params["wq"], precision=prec) + params["bq"]
    K = jnp.einsum("bsh,hd->bsd", X, params["wk"], precision=prec) + params["bk"]
    V = jnp.einsum("bsh,hd->bsd", X, params["wv"], precision=prec) + params["bv"]
    Q = Q.reshape(B, S, num_head, head_dim).transpose(0, 2, 1, 3)
    K = K.reshape(B, S, num_kv_head, head_dim).transpose(0, 2, 1, 3)
    V = V.reshape(B, S, num_kv_head, head_dim).transpose(0, 2, 1, 3)
    K = jnp.repeat(K, num_group, axis=1)
    V = jnp.repeat(V, num_group, axis=1)
    s = jnp.einsum("bhqd,bhkd->bhqk", Q, K, precision=prec) / math.sqrt(head_dim)
    p = jax.nn.softmax(s, axis=-1)
    h = jnp.einsum("bhqk,bhkd->bhqd", p, V, precision=prec)
    h = h.transpose(0, 2, 1, 3).reshape(B, S, H)
    return jnp.einsum("bsh,hd->bsd", h, params["wo"], precision=prec) + params["bo"]


def init_params(key, hidden_dim, num_head, num_group, dtype=jnp.float32):
    head_dim = hidden_dim // num_head
    num_kv_head = num_head // num_group
    kv_dim = num_kv_head * head_dim
    ks = jax.random.split(key, 8)

    def uinit(k, fan_in, shape):
        bound = 1.0 / math.sqrt(fan_in)
        return jax.random.uniform(k, shape, dtype, -bound, bound)

    return {
        "wq": uinit(ks[0], hidden_dim, (hidden_dim, hidden_dim)),
        "bq": uinit(ks[1], hidden_dim, (hidden_dim,)),
        "wk": uinit(ks[2], hidden_dim, (hidden_dim, kv_dim)),
        "bk": uinit(ks[3], hidden_dim, (kv_dim,)),
        "wv": uinit(ks[4], hidden_dim, (hidden_dim, kv_dim)),
        "bv": uinit(ks[5], hidden_dim, (kv_dim,)),
        "wo": uinit(ks[6], hidden_dim, (hidden_dim, hidden_dim)),
        "bo": uinit(ks[7], hidden_dim, (hidden_dim,)),
    }


if __name__ == "__main__":
    # --- Test 1: tiny toy shape (head_dim=8 -> host-relayout fallback path) ---
    B, S, hidden_dim = 2, 16, 32
    num_head, num_group = 4, 2          # -> num_kv_head = 2, head_dim = 8
    key = jax.random.PRNGKey(0)
    k_x, k_p = jax.random.split(key)
    X = jax.random.normal(k_x, (B, S, hidden_dim), jnp.float32)
    params = init_params(k_p, hidden_dim, num_head, num_group)
    prepared = prepare_params(params, num_head, num_group)

    fwd = jax.jit(functools.partial(
        group_query_attn_forward,
        num_head=num_head, num_group=num_group,
        block_q=8, block_kv=8,          # exercise the multi-kv-block online softmax
        lin_block_m=16))                # exercise the tiled-linear m grid
    out = jax.block_until_ready(fwd(X, prepared))
    ref = reference_forward(X, params, num_head, num_group)
    assert out.shape == (B, S, hidden_dim)
    assert jnp.allclose(out, ref, rtol=2e-3, atol=2e-3), "fallback path mismatch"

    # --- Test 2: lane-aligned head_dim=128 -> packed no-relayout fast path ---
    B2, S2, hidden2 = 2, 16, 512
    num_head2, num_group2 = 4, 2        # -> num_kv_head = 2, head_dim = 128
    k_x2, k_p2 = jax.random.split(jax.random.PRNGKey(1))
    X2 = jax.random.normal(k_x2, (B2, S2, hidden2), jnp.float32)
    params2 = init_params(k_p2, hidden2, num_head2, num_group2)
    prepared2 = prepare_params(params2, num_head2, num_group2)

    fwd2 = jax.jit(functools.partial(
        group_query_attn_forward,
        num_head=num_head2, num_group=num_group2,
        block_q=8, block_kv=8))         # multiple q/kv blocks through the fast path
    out2 = jax.block_until_ready(fwd2(X2, prepared2))
    ref2 = reference_forward(X2, params2, num_head2, num_group2)
    assert out2.shape == (B2, S2, hidden2)
    assert jnp.allclose(out2, ref2, rtol=2e-2, atol=2e-2), "packed path mismatch"

    print("KERNEL_OK")
</pallas_src>

<mosaic_0001>
module attributes {stable_mosaic.version = 11 : i64} {
  func.func @_linear_kernel(%arg0: i32, %arg1: i32, %arg2: i32, %arg3: memref<16x32xf32, #tpu.memory_space<vmem>>, %arg4: memref<32x64xf32, #tpu.memory_space<vmem>>, %arg5: memref<1x64xf32, #tpu.memory_space<vmem>>, %arg6: memref<16x64xf32, #tpu.memory_space<vmem>>, %arg7: memref<16x64xf32, #tpu.memory_space<vmem>>) attributes {dimension_semantics = [#tpu.dimension_semantics<parallel>, #tpu.dimension_semantics<parallel>, #tpu.dimension_semantics<arbitrary>], iteration_bounds = array<i64: 2, 1, 1>, scalar_prefetch = 0 : i64, scratch_operands = 1 : i64, tpu.core_type = #tpu.core_type<tc>, window_params = [{transform_indices = @transform_0, window_bounds = array<i64: 16, 32>}, {transform_indices = @transform_1, window_bounds = array<i64: 32, 64>}, {transform_indices = @transform_2, window_bounds = array<i64: 1, 64>}, {transform_indices = @transform_3, window_bounds = array<i64: 16, 64>}]} {
    %c0_i32 = arith.constant 0 : i32
    %0 = arith.cmpi eq, %arg2, %c0_i32 : i32
    %1 = arith.extui %0 : i1 to i32
    %c0_i32_0 = arith.constant 0 : i32
    %2 = arith.cmpi ne, %1, %c0_i32_0 : i32
    scf.if %2 {
      %cst_10 = arith.constant 0.000000e+00 : f32
      %12 = vector.broadcast %cst_10 : f32 to vector<16x64xf32>
      %c0_11 = arith.constant 0 : index
      %c0_12 = arith.constant 0 : index
      %13 = vector.load %arg7[%c0_11, %c0_12] : memref<16x64xf32, #tpu.memory_space<vmem>>, vector<16x64xf32>
      tpu.vector_store %arg7[%c0_11, %c0_12], %12 {strides = array<i32>} : memref<16x64xf32, #tpu.memory_space<vmem>>, vector<16x64xf32>,
    } else {
    }
    %c0 = arith.constant 0 : index
    %c0_1 = arith.constant 0 : index
    %3 = vector.load %arg7[%c0, %c0_1] : memref<16x64xf32, #tpu.memory_space<vmem>>, vector<16x64xf32>
    %c0_2 = arith.constant 0 : index
    %c0_3 = arith.constant 0 : index
    %4 = vector.load %arg3[%c0_2, %c0_3] : memref<16x32xf32, #tpu.memory_space<vmem>>, vector<16x32xf32>
    %c0_4 = arith.constant 0 : index
    %c0_5 = arith.constant 0 : index
    %5 = vector.load %arg4[%c0_4, %c0_5] : memref<32x64xf32, #tpu.memory_space<vmem>>, vector<32x64xf32>
    %cst = arith.constant dense<0.000000e+00> : vector<16x64xf32>
    %6 = tpu.matmul %4, %5, %cst {dimension_numbers = #tpu.dot_dimension_numbers<[1], [0], [0], [1], [0, 0, 1, 1], [], []>} : vector<16x32xf32>, vector<32x64xf32>, vector<16x64xf32> -> vector<16x64xf32>
    %7 = arith.addf %3, %6 : vector<16x64xf32>
    %c0_6 = arith.constant 0 : index
    %c0_7 = arith.constant 0 : index
    %8 = vector.load %arg7[%c0_6, %c0_7] : memref<16x64xf32, #tpu.memory_space<vmem>>, vector<16x64xf32>
    tpu.vector_store %arg7[%c0_6, %c0_7], %7 {strides = array<i32>} : memref<16x64xf32, #tpu.memory_space<vmem>>, vector<16x64xf32>,
    %c0_i32_8 = arith.constant 0 : i32
    %9 = arith.cmpi eq, %arg2, %c0_i32_8 : i32
    %10 = arith.extui %9 : i1 to i32
    %c0_i32_9 = arith.constant 0 : i32
    %11 = arith.cmpi ne, %10, %c0_i32_9 : i32
    scf.if %11 {
      %c0_10 = arith.constant 0 : index
      %c0_11 = arith.constant 0 : index
      %12 = vector.load %arg7[%c0_10, %c0_11] : memref<16x64xf32, #tpu.memory_space<vmem>>, vector<16x64xf32>
      %c0_12 = arith.constant 0 : index
      %c0_13 = arith.constant 0 : index
      %13 = vector.load %arg5[%c0_12, %c0_13] : memref<1x64xf32, #tpu.memory_space<vmem>>, vector<1x64xf32>
      %14 = vector.broadcast %13 : vector<1x64xf32> to vector<16x64xf32>
      %15 = arith.addf %12, %14 : vector<16x64xf32>
      %c0_14 = arith.constant 0 : index
      %c0_15 = arith.constant 0 : index
      %16 = vector.load %arg6[%c0_14, %c0_15] : memref<16x64xf32, #tpu.memory_space<vmem>>, vector<16x64xf32>
      tpu.vector_store %arg6[%c0_14, %c0_15], %15 {strides = array<i32>} : memref<16x64xf32, #tpu.memory_space<vmem>>, vector<16x64xf32>,
    } else {
    }
    return
  }
  func.func @transform_0(%arg0: i32, %arg1: i32, %arg2: i32) -> (i32, i32) {
    %c0_i32 = arith.constant 0 : i32
    return %arg0, %arg2 : i32, i32
  }
  func.func @transform_1(%arg0: i32, %arg1: i32, %arg2: i32) -> (i32, i32) {
    %c0_i32 = arith.constant 0 : i32
    return %arg2, %arg1 : i32, i32
  }
  func.func @transform_2(%arg0: i32, %arg1: i32, %arg2: i32) -> (i32, i32) {
    %c0_i32 = arith.constant 0 : i32
    %c0_i32_0 = arith.constant 0 : i32
    return %c0_i32, %arg1 : i32, i32
  }
  func.func @transform_3(%arg0: i32, %arg1: i32, %arg2: i32) -> (i32, i32) {
    %c0_i32 = arith.constant 0 : i32
    return %arg0, %arg1 : i32, i32
  }
}

module attributes {stable_mosaic.version = 11 : i64} {
  func.func @_gqa_flash_kernel_rows(%arg0: i32, %arg1: i32, %arg2: i32, %arg3: i32, %arg4: memref<1x1x16x8xf32, #tpu.memory_space<vmem>>, %arg5: memref<1x1x8x8xf32, #tpu.memory_space<vmem>>, %arg6: memref<1x1x8x8xf32, #tpu.memory_space<vmem>>, %arg7: memref<1x1x16x8xf32, #tpu.memory_space<vmem>>, %arg8: memref<16x1xf32, #tpu.memory_space<vmem>>, %arg9: memref<16x1xf32, #tpu.memory_space<vmem>>, %arg10: memref<16x8xf32, #tpu.memory_space<vmem>>) attributes {dimension_semantics = [#tpu.dimension_semantics<parallel>, #tpu.dimension_semantics<parallel>, #tpu.dimension_semantics<parallel>, #tpu.dimension_semantics<arbitrary>], iteration_bounds = array<i64: 2, 2, 2, 2>, scalar_prefetch = 0 : i64, scratch_operands = 3 : i64, tpu.core_type = #tpu.core_type<tc>, window_params = [{transform_indices = @transform_0, window_bounds = array<i64: 1, 1, 16, 8>}, {transform_indices = @transform_1, window_bounds = array<i64: 1, 1, 8, 8>}, {transform_indices = @transform_2, window_bounds = array<i64: 1, 1, 8, 8>}, {transform_indices = @transform_3, window_bounds = array<i64: 1, 1, 16, 8>}]} {
    %c0_i32 = arith.constant 0 : i32
    %0 = arith.cmpi eq, %arg3, %c0_i32 : i32
    %1 = arith.extui %0 : i1 to i32
    %c0_i32_0 = arith.constant 0 : i32
    %2 = arith.cmpi ne, %1, %c0_i32_0 : i32
    scf.if %2 {
      %cst_28 = arith.constant 0xFF800000 : f32
      %35 = vector.broadcast %cst_28 : f32 to vector<16x1xf32>
      %c0_29 = arith.constant 0 : index
      %c0_30 = arith.constant 0 : index
      %36 = vector.load %arg8[%c0_29, %c0_30] : memref<16x1xf32, #tpu.memory_space<vmem>>, vector<16x1xf32>
      tpu.vector_store %arg8[%c0_29, %c0_30], %35 {strides = array<i32>} : memref<16x1xf32, #tpu.memory_space<vmem>>, vector<16x1xf32>,
      %cst_31 = arith.constant 0.000000e+00 : f32
      %37 = vector.broadcast %cst_31 : f32 to vector<16x1xf32>
      %c0_32 = arith.constant 0 : index
      %c0_33 = arith.constant 0 : index
      %38 = vector.load %arg9[%c0_32, %c0_33] : memref<16x1xf32, #tpu.memory_space<vmem>>, vector<16x1xf32>
      tpu.vector_store %arg9[%c0_32, %c0_33], %37 {strides = array<i32>} : memref<16x1xf32, #tpu.memory_space<vmem>>, vector<16x1xf32>,
      %cst_34 = arith.constant 0.000000e+00 : f32
      %39 = vector.broadcast %cst_34 : f32 to vector<16x8xf32>
      %c0_35 = arith.constant 0 : index
      %c0_36 = arith.constant 0 : index
      %40 = vector.load %arg10[%c0_35, %c0_36] : memref<16x8xf32, #tpu.memory_space<vmem>>, vector<16x8xf32>
      tpu.vector_store %arg10[%c0_35, %c0_36], %39 {strides = array<i32>} : memref<16x8xf32, #tpu.memory_space<vmem>>, vector<16x8xf32>,
    } else {
    }
    %c0 = arith.constant 0 : index
    %c0_1 = arith.constant 0 : index
    %c0_2 = arith.constant 0 : index
    %c0_3 = arith.constant 0 : index
    %3 = vector.load %arg4[%c0, %c0_1, %c0_2, %c0_3] : memref<1x1x16x8xf32, #tpu.memory_space<vmem>>, vector<1x1x16x8xf32>
    %4 = vector.shape_cast %3 : vector<1x1x16x8xf32> to vector<16x8xf32>
    %c0_4 = arith.constant 0 : index
    %c0_5 = arith.constant 0 : index
    %c0_6 = arith.constant 0 : index
    %c0_7 = arith.constant 0 : index
    %5 = vector.load %arg5[%c0_4, %c0_5, %c0_6, %c0_7] : memref<1x1x8x8xf32, #tpu.memory_space<vmem>>, vector<1x1x8x8xf32>
    %6 = vector.shape_cast %5 : vector<1x1x8x8xf32> to vector<8x8xf32>
    %c0_8 = arith.constant 0 : index
    %c0_9 = arith.constant 0 : index
    %c0_10 = arith.constant 0 : index
    %c0_11 = arith.constant 0 : index
    %7 = vector.load %arg6[%c0_8, %c0_9, %c0_10, %c0_11] : memref<1x1x8x8xf32, #tpu.memory_space<vmem>>, vector<1x1x8x8xf32>
    %8 = vector.shape_cast %7 : vector<1x1x8x8xf32> to vector<8x8xf32>
    %cst = arith.constant dense<0.000000e+00> : vector<16x8xf32>
    %9 = tpu.matmul %4, %6, %cst {dimension_numbers = #tpu.dot_dimension_numbers<[1], [1], [0], [0], [0, 0, 1, 0], [], []>} : vector<16x8xf32>, vector<8x8xf32>, vector<16x8xf32> -> vector<16x8xf32>
    %c0_12 = arith.constant 0 : index
    %c0_13 = arith.constant 0 : index
    %10 = vector.load %arg8[%c0_12, %c0_13] : memref<16x1xf32, #tpu.memory_space<vmem>>, vector<16x1xf32>
    %cst_14 = arith.constant dense<0xFF800000> : vector<16xf32>
    %11 = vector.multi_reduction <maximumf>, %9, %cst_14 [1] : vector<16x8xf32> to vector<16xf32>
    %12 = vector.shape_cast %11 : vector<16xf32> to vector<16x1xf32>
    %13 = arith.maximumf %10, %12 : vector<16x1xf32>
    %14 = arith.subf %10, %13 : vector<16x1xf32>
    %15 = math.exp %14 : vector<16x1xf32>
    %16 = vector.broadcast %13 : vector<16x1xf32> to vector<16x8xf32>
    %17 = arith.subf %9, %16 : vector<16x8xf32>
    %18 = math.exp %17 : vector<16x8xf32>
    %c0_15 = arith.constant 0 : index
    %c0_16 = arith.constant 0 : index
    %19 = vector.load %arg9[%c0_15, %c0_16] : memref<16x1xf32, #tpu.memory_space<vmem>>, vector<16x1xf32>
    %20 = arith.mulf %15, %19 : vector<16x1xf32>
    %cst_17 = arith.constant dense<0.000000e+00> : vector<16xf32>
    %21 = vector.multi_reduction <add>, %18, %cst_17 [1] : vector<16x8xf32> to vector<16xf32>
    %22 = vector.shape_cast %21 : vector<16xf32> to vector<16x1xf32>
    %23 = arith.addf %20, %22 : vector<16x1xf32>
    %c0_18 = arith.constant 0 : index
    %c0_19 = arith.constant 0 : index
    %24 = vector.load %arg9[%c0_18, %c0_19] : memref<16x1xf32, #tpu.memory_space<vmem>>, vector<16x1xf32>
    tpu.vector_store %arg9[%c0_18, %c0_19], %23 {strides = array<i32>} : memref<16x1xf32, #tpu.memory_space<vmem>>, vector<16x1xf32>,
    %cst_20 = arith.constant dense<0.000000e+00> : vector<16x8xf32>
    %25 = tpu.matmul %18, %8, %cst_20 {dimension_numbers = #tpu.dot_dimension_numbers<[1], [0], [0], [1], [0, 0, 1, 1], [], []>} : vector<16x8xf32>, vector<8x8xf32>, vector<16x8xf32> -> vector<16x8xf32>
    %c0_21 = arith.constant 0 : index
    %c0_22 = arith.constant 0 : index
    %26 = vector.load %arg10[%c0_21, %c0_22] : memref<16x8xf32, #tpu.memory_space<vmem>>, vector<16x8xf32>
    %27 = vector.broadcast %15 : vector<16x1xf32> to vector<16x8xf32>
    %28 = arith.mulf %27, %26 : vector<16x8xf32>
    %29 = arith.addf %28, %25 : vector<16x8xf32>
    %c0_23 = arith.constant 0 : index
    %c0_24 = arith.constant 0 : index
    %30 = vector.load %arg10[%c0_23, %c0_24] : memref<16x8xf32, #tpu.memory_space<vmem>>, vector<16x8xf32>
    tpu.vector_store %arg10[%c0_23, %c0_24], %29 {strides = array<i32>} : memref<16x8xf32, #tpu.memory_space<vmem>>, vector<16x8xf32>,
    %c0_25 = arith.constant 0 : index
    %c0_26 = arith.constant 0 : index
    %31 = vector.load %arg8[%c0_25, %c0_26] : memref<16x1xf32, #tpu.memory_space<vmem>>, vector<16x1xf32>
    tpu.vector_store %arg8[%c0_25, %c0_26], %13 {strides = array<i32>} : memref<16x1xf32, #tpu.memory_space<vmem>>, vector<16x1xf32>,
    %c1_i32 = arith.constant 1 : i32
    %32 = arith.cmpi eq, %arg3, %c1_i32 : i32
    %33 = arith.extui %32 : i1 to i32
    %c0_i32_27 = arith.constant 0 : i32
    %34 = arith.cmpi ne, %33, %c0_i32_27 : i32
    scf.if %34 {
      %c0_28 = arith.constant 0 : index
      %c0_29 = arith.constant 0 : index
      %35 = vector.load %arg9[%c0_28, %c0_29] : memref<16x1xf32, #tpu.memory_space<vmem>>, vector<16x1xf32>
      %36 = tpu.reciprocal %35 : vector<16x1xf32> -> vector<16x1xf32>
      %c0_30 = arith.constant 0 : index
      %c0_31 = arith.constant 0 : index
      %37 = vector.load %arg10[%c0_30, %c0_31] : memref<16x8xf32, #tpu.memory_space<vmem>>, vector<16x8xf32>
      %38 = vector.broadcast %36 : vector<16x1xf32> to vector<16x8xf32>
      %39 = arith.mulf %37, %38 : vector<16x8xf32>
      %c0_32 = arith.constant 0 : index
      %c0_33 = arith.constant 0 : index
      %c0_34 = arith.constant 0 : index
      %c0_35 = arith.constant 0 : index
      %40 = vector.load %arg7[%c0_32, %c0_33, %c0_34, %c0_35] : memref<1x1x16x8xf32, #tpu.memory_space<vmem>>, vector<1x1x16x8xf32>
      %41 = vector.shape_cast %40 : vector<1x1x16x8xf32> to vector<16x8xf32>
      %42 = vector.shape_cast %39 : vector<16x8xf32> to vector<1x1x16x8xf32>
      tpu.vector_store %arg7[%c0_32, %c0_33, %c0_34, %c0_35], %42 {strides = array<i32>} : memref<1x1x16x8xf32, #tpu.memory_space<vmem>>, vector<1x1x16x8xf32>,
    } else {
    }
    return
  }
  func.func @transform_0(%arg0: i32, %arg1: i32, %arg2: i32, %arg3: i32) -> (i32, i32, i32, i32) {
    %c0_i32 = arith.constant 0 : i32
    %c0_i32_0 = arith.constant 0 : i32
    return %arg0, %arg1, %arg2, %c0_i32 : i32, i32, i32, i32
  }
  func.func @transform_1(%arg0: i32, %arg1: i32, %arg2: i32, %arg3: i32) -> (i32, i32, i32, i32) {
    %c0_i32 = arith.constant 0 : i32
    %c0_i32_0 = arith.constant 0 : i32
    return %arg0, %arg1, %arg3, %c0_i32 : i32, i32, i32, i32
  }
  func.func @transform_2(%arg0: i32, %arg1: i32, %arg2: i32, %arg3: i32) -> (i32, i32, i32, i32) {
    %c0_i32 = arith.constant 0 : i32
    %c0_i32_0 = arith.constant 0 : i32
    return %arg0, %arg1, %arg3, %c0_i32 : i32, i32, i32, i32
  }
  func.func @transform_3(%arg0: i32, %arg1: i32, %arg2: i32, %arg3: i32) -> (i32, i32, i32, i32) {
    %c0_i32 = arith.constant 0 : i32
    %c0_i32_0 = arith.constant 0 : i32
    return %arg0, %arg1, %arg2, %c0_i32 : i32, i32, i32, i32
  }
}

module attributes {stable_mosaic.version = 11 : i64} {
  func.func @_linear_kernel(%arg0: i32, %arg1: i32, %arg2: i32, %arg3: memref<16x32xf32, #tpu.memory_space<vmem>>, %arg4: memref<32x32xf32, #tpu.memory_space<vmem>>, %arg5: memref<1x32xf32, #tpu.memory_space<vmem>>, %arg6: memref<16x32xf32, #tpu.memory_space<vmem>>, %arg7: memref<16x32xf32, #tpu.memory_space<vmem>>) attributes {dimension_semantics = [#tpu.dimension_semantics<parallel>, #tpu.dimension_semantics<parallel>, #tpu.dimension_semantics<arbitrary>], iteration_bounds = array<i64: 2, 1, 1>, scalar_prefetch = 0 : i64, scratch_operands = 1 : i64, tpu.core_type = #tpu.core_type<tc>, window_params = [{transform_indices = @transform_0, window_bounds = array<i64: 16, 32>}, {transform_indices = @transform_1, window_bounds = array<i64: 32, 32>}, {transform_indices = @transform_2, window_bounds = array<i64: 1, 32>}, {transform_indices = @transform_3, window_bounds = array<i64: 16, 32>}]} {
    %c0_i32 = arith.constant 0 : i32
    %0 = arith.cmpi eq, %arg2, %c0_i32 : i32
    %1 = arith.extui %0 : i1 to i32
    %c0_i32_0 = arith.constant 0 : i32
    %2 = arith.cmpi ne, %1, %c0_i32_0 : i32
    scf.if %2 {
      %cst_10 = arith.constant 0.000000e+00 : f32
      %12 = vector.broadcast %cst_10 : f32 to vector<16x32xf32>
      %c0_11 = arith.constant 0 : index
      %c0_12 = arith.constant 0 : index
      %13 = vector.load %arg7[%c0_11, %c0_12] : memref<16x32xf32, #tpu.memory_space<vmem>>, vector<16x32xf32>
      tpu.vector_store %arg7[%c0_11, %c0_12], %12 {strides = array<i32>} : memref<16x32xf32, #tpu.memory_space<vmem>>, vector<16x32xf32>,
    } else {
    }
    %c0 = arith.constant 0 : index
    %c0_1 = arith.constant 0 : index
    %3 = vector.load %arg7[%c0, %c0_1] : memref<16x32xf32, #tpu.memory_space<vmem>>, vector<16x32xf32>
    %c0_2 = arith.constant 0 : index
    %c0_3 = arith.constant 0 : index
    %4 = vector.load %arg3[%c0_2, %c0_3] : memref<16x32xf32, #tpu.memory_space<vmem>>, vector<16x32xf32>
    %c0_4 = arith.constant 0 : index
    %c0_5 = arith.constant 0 : index
    %5 = vector.load %arg4[%c0_4, %c0_5] : memref<32x32xf32, #tpu.memory_space<vmem>>, vector<32x32xf32>
    %cst = arith.constant dense<0.000000e+00> : vector<16x32xf32>
    %6 = tpu.matmul %4, %5, %cst {dimension_numbers = #tpu.dot_dimension_numbers<[1], [0], [0], [1], [0, 0, 1, 1], [], []>} : vector<16x32xf32>, vector<32x32xf32>, vector<16x32xf32> -> vector<16x32xf32>
    %7 = arith.addf %3, %6 : vector<16x32xf32>
    %c0_6 = arith.constant 0 : index
    %c0_7 = arith.constant 0 : index
    %8 = vector.load %arg7[%c0_6, %c0_7] : memref<16x32xf32, #tpu.memory_space<vmem>>, vector<16x32xf32>
    tpu.vector_store %arg7[%c0_6, %c0_7], %7 {strides = array<i32>} : memref<16x32xf32, #tpu.memory_space<vmem>>, vector<16x32xf32>,
    %c0_i32_8 = arith.constant 0 : i32
    %9 = arith.cmpi eq, %arg2, %c0_i32_8 : i32
    %10 = arith.extui %9 : i1 to i32
    %c0_i32_9 = arith.constant 0 : i32
    %11 = arith.cmpi ne, %10, %c0_i32_9 : i32
    scf.if %11 {
      %c0_10 = arith.constant 0 : index
      %c0_11 = arith.constant 0 : index
      %12 = vector.load %arg7[%c0_10, %c0_11] : memref<16x32xf32, #tpu.memory_space<vmem>>, vector<16x32xf32>
      %c0_12 = arith.constant 0 : index
      %c0_13 = arith.constant 0 : index
      %13 = vector.load %arg5[%c0_12, %c0_13] : memref<1x32xf32, #tpu.memory_space<vmem>>, vector<1x32xf32>
      %14 = vector.broadcast %13 : vector<1x32xf32> to vector<16x32xf32>
      %15 = arith.addf %12, %14 : vector<16x32xf32>
      %c0_14 = arith.constant 0 : index
      %c0_15 = arith.constant 0 : index
      %16 = vector.load %arg6[%c0_14, %c0_15] : memref<16x32xf32, #tpu.memory_space<vmem>>, vector<16x32xf32>
      tpu.vector_store %arg6[%c0_14, %c0_15], %15 {strides = array<i32>} : memref<16x32xf32, #tpu.memory_space<vmem>>, vector<16x32xf32>,
    } else {
    }
    return
  }
  func.func @transform_0(%arg0: i32, %arg1: i32, %arg2: i32) -> (i32, i32) {
    %c0_i32 = arith.constant 0 : i32
    return %arg0, %arg2 : i32, i32
  }
  func.func @transform_1(%arg0: i32, %arg1: i32, %arg2: i32) -> (i32, i32) {
    %c0_i32 = arith.constant 0 : i32
    return %arg2, %arg1 : i32, i32
  }
  func.func @transform_2(%arg0: i32, %arg1: i32, %arg2: i32) -> (i32, i32) {
    %c0_i32 = arith.constant 0 : i32
    %c0_i32_0 = arith.constant 0 : i32
    return %c0_i32, %arg1 : i32, i32
  }
  func.func @transform_3(%arg0: i32, %arg1: i32, %arg2: i32) -> (i32, i32) {
    %c0_i32 = arith.constant 0 : i32
    return %arg0, %arg1 : i32, i32
  }
}

</mosaic_0001>

<llo_original>
// kernel: group_query_attn_forward.3
$region0: #{group_query_attn_forward.3}
  #allocation0 [shape = 'u32[]', space=smem, size = 0x4, offset = 0x4, fixed_abs, tag = 'smem constant byte address 0x4 - core index']
  #allocation1 [shape = 'u32[144,128]{1,0:T(1,128)}', space=vmem, size = 0x12000, scoped, tag = 'internal scratch']
  #allocation2 [shape = 'f32[16,64]{1,0:T(8,128)}', space=vmem, size = 0x2000, scoped, tag = 'scratch operand']
  %s0 = inlined_call_operand.hbm [shape: f32[32,32], index: 0, kind: input, shape index: {}]
  %s1 = inlined_call_operand.hbm [shape: f32[32,64], index: 1, kind: input, shape index: {}]
  %s2 = inlined_call_operand.vmem [shape: f32[1,64], index: 2, kind: input, shape index: {}]
  %s3 = inlined_call_operand.vmem [shape: f32[32,64], index: 3, kind: output, shape index: {}]
  %s4 = sld [smem:[#allocation0]]
  $region61: #{group_query_attn_forward.3} parent=0
    _
  %s6 = ssub.s32 1, %s4
  %s7 = scalar_select 0, %s6, %s4
  $region1: #{group_query_attn_forward.3} parent=0
    #allocation3 [shape = 'u8[16384]{0}', space=vmem, size = 0x4000, scoped, tag = 'input window, operand 0']
    #allocation4 [shape = 's32[2]{0}', space=sflag, size = 0x8, scoped, tag = 'scoped memory for group_query_attn_forward.3']
    #allocation5 [shape = 'u8[16384]{0}', space=vmem, size = 0x4000, scoped, tag = 'input window, operand 1, single buffered']
    #allocation6 [shape = 's32[1]{0}', space=sflag, size = 0x4, scoped, tag = 'scoped memory for group_query_attn_forward.3']
    %8 = vsyncpa [#allocation4], 0
    %s9 = scalar_lea.sflag [#allocation4], 1
    %10 = vsyncpa %s9, 0
    %11 = vsyncpa [#allocation6], 0
    loop: start=0, step=1, limit=4
    $region2: #{group_query_attn_forward.3} parent=1 // loop_pre_header
      _
    $region3: #{group_query_attn_forward.3} parent=1 // loop_header
      %s13 = sphi 0, %s17
      %p14 = scmp.ge.s32.totalorder %s13, 4
      %s20 = sphi 0, %s39
      %s21 = sphi 0, %s35
      %s22 = sphi 0, %s31
      %s23 = sphi 0, %s20
      %s24 = sphi 0, %s21
      %s25 = sphi 0, %s22
      %s26 = sphi 0, %s23
      %s27 = sphi 0, %s24
      %s28 = sphi 0, %s25
      %s44 = sphi 0, %s46
      %s47 = sphi 0, %s44
      %s48 = sphi 0, %s47
      %s64 = sphi 0, %s48
      %s72 = sphi 0, %s74
      %s75 = sphi 0, %s72
      %s76 = sphi 0, %s75
      %s92 = sphi 0, %s76
      %s98 = sphi 0, %s100
      %s101 = sphi 0, %s98
      %s102 = sphi 0, %s101
      %s118 = sphi 0, %s102
      %s126 = sphi 0, %s128
      %s129 = sphi 0, %s126
      %s130 = sphi 0, %s129
      %s146 = sphi 0, %s130
    $region4: #{group_query_attn_forward.3} parent=1 // loop_header_branch
      %16 = sbr.rel (%p14) target = $region8
    $region5: #{group_query_attn_forward.3} parent=1 // loop_body
      %s18 = ssub.s32 %s13, 1
      %s19 = ssub.s32 %s13, 2
      %s29 = sadd.s32 1, %s22
      %p30 = scmp.ge.s32.totalorder %s29, 1
      %s31 = scalar_select %p30, 0, %s29
      %s32 = sadd.s32 1, %s21
      %s33 = scalar_select %p30, %s32, %s21
      %p34 = scmp.ge.s32.totalorder %s33, 1
      %s35 = scalar_select %p34, 0, %s33
      %s36 = sadd.s32 1, %s20
      %s37 = scalar_select %p34, %s36, %s20
      %p38 = scmp.ge.s32.totalorder %s37, 2
      %s39 = scalar_select %p38, 0, %s37
      %s40 = ssub.s32 %s20, %s39
      %s41 = ssub.s32 %s22, %s31
      %s42 = sor.u32 %s40, %s41
      %p43 = scmp.eq.s32.totalorder %s42, 0
      %s45 = sadd.s32 %s44, 1
      %s46 = scalar_select %p43, %s44, %s45
      %p49 = pneg %p43
      %p50 = scmp.eq.s32.totalorder %s13, 1
      %p51 = por %p49, %p50
      %p52 = scmp.ne.s32.totalorder %s44, %s47
      %p53 = scmp.eq.s32.totalorder %s13, 0
      %p54 = por %p52, %p53
      %p55 = scmp.ne.s32.totalorder %s44, %s47
      %p56 = scmp.eq.s32.totalorder %s18, 1
      %p57 = por %p55, %p56
      %p58 = scmp.ne.s32.totalorder %s47, %s48
      %p59 = scmp.eq.s32.totalorder %s18, 0
      %p60 = por %p58, %p59
      %p61 = scmp.ne.s32.totalorder %s47, %s48
      %p62 = scmp.eq.s32.totalorder %s19, 1
      %p63 = por %p61, %p62
      %p65 = scmp.ne.s32.totalorder %s48, %s64
      %p66 = scmp.eq.s32.totalorder %s19, 0
      %p67 = por %p65, %p66
      %s68 = ssub.s32 %s22, %s31
      %s69 = ssub.s32 %s21, %s35
      %s70 = sor.u32 %s68, %s69
      %p71 = scmp.eq.s32.totalorder %s70, 0
      %s73 = sadd.s32 %s72, 1
      %s74 = scalar_select %p71, %s72, %s73
      %p77 = pneg %p71
      %p78 = scmp.eq.s32.totalorder %s13, 1
      %p79 = por %p77, %p78
      %p80 = scmp.ne.s32.totalorder %s72, %s75
      %p81 = scmp.eq.s32.totalorder %s13, 0
      %p82 = por %p80, %p81
      %p83 = scmp.ne.s32.totalorder %s72, %s75
      %p84 = scmp.eq.s32.totalorder %s18, 1
      %p85 = por %p83, %p84
      %p86 = scmp.ne.s32.totalorder %s75, %s76
      %p87 = scmp.eq.s32.totalorder %s18, 0
      %p88 = por %p86, %p87
      %p89 = scmp.ne.s32.totalorder %s75, %s76
      %p90 = scmp.eq.s32.totalorder %s19, 1
      %p91 = por %p89, %p90
      %p93 = scmp.ne.s32.totalorder %s76, %s92
      %p94 = scmp.eq.s32.totalorder %s19, 0
      %p95 = por %p93, %p94
      %s96 = ssub.s32 %s21, %s35
      %p97 = scmp.eq.s32.totalorder %s96, 0
      %s99 = sadd.s32 %s98, 1
      %s100 = scalar_select %p97, %s98, %s99
      %p103 = pneg %p97
      %p104 = scmp.eq.s32.totalorder %s13, 1
      %p105 = por %p103, %p104
      %p106 = scmp.ne.s32.totalorder %s98, %s101
      %p107 = scmp.eq.s32.totalorder %s13, 0
      %p108 = por %p106, %p107
      %p109 = scmp.ne.s32.totalorder %s98, %s101
      %p110 = scmp.eq.s32.totalorder %s18, 1
      %p111 = por %p109, %p110
      %p112 = scmp.ne.s32.totalorder %s101, %s102
      %p113 = scmp.eq.s32.totalorder %s18, 0
      %p114 = por %p112, %p113
      %p115 = scmp.ne.s32.totalorder %s101, %s102
      %p116 = scmp.eq.s32.totalorder %s19, 1
      %p117 = por %p115, %p116
      %p119 = scmp.ne.s32.totalorder %s102, %s118
      %p120 = scmp.eq.s32.totalorder %s19, 0
      %p121 = por %p119, %p120
      %s122 = ssub.s32 %s20, %s39
      %s123 = ssub.s32 %s21, %s35
      %s124 = sor.u32 %s122, %s123
      %p125 = scmp.eq.s32.totalorder %s124, 0
      %s127 = sadd.s32 %s126, 1
      %s128 = scalar_select %p125, %s126, %s127
      %p131 = pneg %p125
      %p132 = scmp.eq.s32.totalorder %s13, 1
      %p133 = por %p131, %p132
      %p134 = scmp.ne.s32.totalorder %s126, %s129
      %p135 = scmp.eq.s32.totalorder %s13, 0
      %p136 = por %p134, %p135
      %p137 = scmp.ne.s32.totalorder %s126, %s129
      %p138 = scmp.eq.s32.totalorder %s18, 1
      %p139 = por %p137, %p138
      %p140 = scmp.ne.s32.totalorder %s129, %s130
      %p141 = scmp.eq.s32.totalorder %s18, 0
      %p142 = por %p140, %p141
      %p143 = scmp.ne.s32.totalorder %s129, %s130
      %p144 = scmp.eq.s32.totalorder %s19, 1
      %p145 = por %p143, %p144
      %p147 = scmp.ne.s32.totalorder %s130, %s146
      %p148 = scmp.eq.s32.totalorder %s19, 0
      %p149 = por %p147, %p148
      %p150 = scmp.le.s32.totalorder 1, %s13
      %p151 = scmp.lt.s32.totalorder %s13, 3
      %p152 = pnand %p150, %p151
      %p153 = pneg %p152
      // Predicated region
      $region9: #{group_query_attn_forward.3} parent=5 // pred_check
        _
      $region10: #{group_query_attn_forward.3} parent=5 // pred_check_branch
        %155 = sbr.rel (%p152) target = $region12
      $region11: #{group_query_attn_forward.3} parent=5 // pred_region
        %s156 = ssub.s32 %s13, 1
        // Predicated region
        $region13: #{group_query_attn_forward.3} parent=11 // pred_check
          %p157 = pneg %p88
        $region14: #{group_query_attn_forward.3} parent=11 // pred_check_branch
          %159 = sbr.rel (%p157) target = $region16
        $region15: #{group_query_attn_forward.3} parent=11 // pred_region
          %s160 = smul.u32 4, %s25
          %s162 = ssub.s32 512, 512
          %163 = vsyncadd [#allocation6], %s162
          %s164 = sadd.s32 %s24, %s160
          %s165 = smul.addr %s164, 128
          %s166 = scalar_lea.hbm %s1, %s165
          %s167 = sshll.u32 [#allocation5], 4
          %s168 = int_to_ptr.vmem [resolvable:$true] %s167
          %173 = dma.hbm_to_vmem [thread:$0]  %s166, 512, %s168, [#allocation6], 128, 128, 8
        $region16: #{group_query_attn_forward.3} parent=11 // pred_fallthru
          _
        // Predicated region
        $region17: #{group_query_attn_forward.3} parent=11 // pred_check
          %p174 = pneg %p114
        $region18: #{group_query_attn_forward.3} parent=11 // pred_check_branch
          %176 = sbr.rel (%p174) target = $region20
        $region19: #{group_query_attn_forward.3} parent=11 // pred_region
          %p177 = scmp.lt.s32.totalorder %s24, 0
          %s178 = scalar_select %p177, %s24, 0
          %s179 = scalar_lea.vmem %s2, %s178
        $region20: #{group_query_attn_forward.3} parent=11 // pred_fallthru
          _
      $region12: #{group_query_attn_forward.3} parent=5 // pred_fallthru
        _
      %p180 = scmp.lt.s32.totalorder %s13, 2
      // Predicated region
      $region21: #{group_query_attn_forward.3} parent=5 // pred_check
        %p181 = pneg %p180
      $region22: #{group_query_attn_forward.3} parent=5 // pred_check_branch
        %183 = sbr.rel (%p181) target = $region24
      $region23: #{group_query_attn_forward.3} parent=5 // pred_region
        // Predicated region
        $region25: #{group_query_attn_forward.3} parent=23 // pred_check
          %p184 = pneg %p54
        $region26: #{group_query_attn_forward.3} parent=23 // pred_check_branch
          %186 = sbr.rel (%p184) target = $region28
        $region27: #{group_query_attn_forward.3} parent=23 // pred_region
          %s187 = sand.u32 %s44, 1
          %s188 = scalar_lea.sflag [#allocation4], %s187
          %s189 = sand.u32 %s44, 1
          %s190 = smul.addr %s189, 16
          %s191 = scalar_lea.vmem [#allocation3], %s190
          %s192 = smul.u32 2, %s20
          %s194 = ssub.s32 256, 256
          %195 = vsyncadd %s188, %s194
          %s196 = sadd.s32 %s22, %s192
          %s197 = smul.addr %s196, 128
          %s198 = scalar_lea.hbm %s0, %s197
          %s199 = sshll.u32 %s191, 4
          %s200 = int_to_ptr.vmem [resolvable:$true] %s199
          %205 = dma.hbm_to_vmem [thread:$0]  %s198, 256, %s200, %s188, 128, 128, 8
        $region28: #{group_query_attn_forward.3} parent=23 // pred_fallthru
          _
      $region24: #{group_query_attn_forward.3} parent=5 // pred_fallthru
        _
      %p206 = scmp.le.s32.totalorder 1, %s13
      %p207 = scmp.lt.s32.totalorder %s13, 3
      %p208 = pnand %p206, %p207
      %p209 = pneg %p208
      // Predicated region
      $region29: #{group_query_attn_forward.3} parent=5 // pred_check
        _
      $region30: #{group_query_attn_forward.3} parent=5 // pred_check_branch
        %211 = sbr.rel (%p208) target = $region32
      $region31: #{group_query_attn_forward.3} parent=5 // pred_region
        %s212 = ssub.s32 %s13, 1
        %s213 = sand.u32 %s47, 1
        %s214 = scalar_lea.sflag [#allocation4], %s213
        %s215 = sand.u32 %s47, 1
        %s216 = smul.addr %s215, 16
        %s217 = scalar_lea.vmem [#allocation3], %s216
        // Predicated region
        $region33: #{group_query_attn_forward.3} parent=31 // pred_check
          %p218 = pneg %p60
        $region34: #{group_query_attn_forward.3} parent=31 // pred_check_branch
          %220 = sbr.rel (%p218) target = $region36
        $region35: #{group_query_attn_forward.3} parent=31 // pred_region
          %221 = dma.done %s214, 256
        $region36: #{group_query_attn_forward.3} parent=31 // pred_fallthru
          _
        // Predicated region
        $region37: #{group_query_attn_forward.3} parent=31 // pred_check
          %p222 = pneg %p88
        $region38: #{group_query_attn_forward.3} parent=31 // pred_check_branch
          %224 = sbr.rel (%p222) target = $region40
        $region39: #{group_query_attn_forward.3} parent=31 // pred_region
          %225 = dma.done [#allocation6], 512
        $region40: #{group_query_attn_forward.3} parent=31 // pred_fallthru
          _
        %s226 = sand.u32 %s47, 1
        %s227 = scalar_lea.sflag [#allocation4], %s226
        %s228 = sand.u32 %s47, 1
        %s229 = smul.addr %s228, 16
        %s230 = scalar_lea.vmem [#allocation3], %s229
        %p231 = pneg %p60
        %p232 = pneg %p57
        %p233 = pneg %p88
        %p234 = pneg %p85
        %p235 = scmp.lt.s32.totalorder %s24, 0
        %s236 = scalar_select %p235, %s24, 0
        %s237 = scalar_lea.vmem %s2, %s236
        %p238 = pneg %p114
        %p239 = pneg %p111
        %p240 = pneg %p142
        %p241 = pneg %p139
        %s242 = smul.u32 2, %s23
        %p243 = scmp.lt.s32.totalorder %s242, 3
        %s244 = scalar_select %p243, %s242, 3
        %p245 = scmp.lt.s32.totalorder %s24, 0
        %s246 = scalar_select %p245, %s24, 0
        %s247 = sadd.s32 %s246, %s244
        %s248 = smul.addr %s247, 8
        %s249 = scalar_lea.vmem %s3, %s248
        %s250 = smul.u32 2, %s23
        %s251 = smul.u32 4, %s25
        %p252 = scmp.lt.s32.totalorder %s24, 0
        %s253 = scalar_select %p252, %s24, 0
        %s254 = scalar_lea.vmem %s2, %s253
        %s255 = smul.u32 2, %s23
        %p256 = scmp.lt.s32.totalorder %s255, 3
        %s257 = scalar_select %p256, %s255, 3
        %p258 = scmp.lt.s32.totalorder %s24, 0
        %s259 = scalar_select %p258, %s24, 0
        %s260 = sadd.s32 %s259, %s257
        %s261 = smul.addr %s260, 8
        %s262 = scalar_lea.vmem %s3, %s261
        %s263 = smul.u32 2, %s23
        %p264 = scmp.eq.s32.totalorder %s25, 0
        // Predicated region
        $region41: #{group_query_attn_forward.3} parent=31 // pred_check
          %p265 = pneg %p264
        $region42: #{group_query_attn_forward.3} parent=31 // pred_check_branch
          %267 = sbr.rel (%p265) target = $region44
        $region43: #{group_query_attn_forward.3} parent=31 // pred_region
          %vm268 = vcmask 523264
          %269 = vst.msk [vmem:[#allocation2] sm:$0xff] %vm268, 0.0
          %270 = vst.msk [vmem:[#allocation2 + $0x8] sm:$0xff] %vm268, 0.0
        $region44: #{group_query_attn_forward.3} parent=31 // pred_fallthru
          _
        %v271 = vld [vmem:[#allocation2] sm:$0xff]
        %v272 = vld [vmem:[#allocation2 + $0x8] sm:$0xff]
        %v273 = vld [vmem:[%s217] sm:$0xff]
        %v274 = vld [vmem:[%s217 + $0x8] sm:$0xff]
        %v275 = vld [vmem:[#allocation5] sm:$0xff]
        %v276 = vld [vmem:[#allocation5 + $0x8] sm:$0xff]
        %v277 = vld [vmem:[#allocation5 + $0x10] sm:$0xff]
        %v278 = vld [vmem:[#allocation5 + $0x18] sm:$0xff]
        %vm279 = vcmask 261120
        %v281 = vsel %vm279, %v273, 0
        %v284 = vsel %vm279, %v274, 0
        %286 = vmatprep.subr.mxu0 0.0
        %287 = vmatpush1.msra.mxu0 %v275
        %288 = vmatprep.subr.mxu0 0.0
        %289 = vmatpush1.msra.mxu0 %v276
        %290 = vmatprep.subr.mxu0 0.0
        %291 = vmatpush1.msra.mxu0 %v277
        %292 = vmatprep.subr.mxu0 0.0
        %293 = vmatpush1.msra.mxu0 %v278
        %294 = vmatprep.subr.mxu0 0.0
        %295 = vmatpush1.msra.mxu0 0.0
        %296 = vmatprep.subr.mxu0 0.0
        %297 = vmatpush1.msra.mxu0 0.0
        %298 = vmatprep.subr.mxu0 0.0
        %299 = vmatpush1.msra.mxu0 0.0
        %300 = vmatprep.subr.mxu0 0.0
        %301 = vmatpush1.msra.mxu0 0.0
        %302 = vmatprep.subr.mxu0 0.0
        %303 = vmatpush1.msra.mxu0 0.0
        %304 = vmatprep.subr.mxu0 0.0
        %305 = vmatpush1.msra.mxu0 0.0
        %306 = vmatprep.subr.mxu0 0.0
        %307 = vmatpush1.msra.mxu0 0.0
        %308 = vmatprep.subr.mxu0 0.0
        %309 = vmatpush1.msra.mxu0 0.0
        %310 = vmatprep.subr.mxu0 0.0
        %311 = vmatpush1.msra.mxu0 0.0
        %312 = vmatprep.subr.mxu0 0.0
        %313 = vmatpush1.msra.mxu0 0.0
        %314 = vmatprep.subr.mxu0 0.0
        %315 = vmatpush1.msra.mxu0 0.0
        %316 = vmatprep.subr.mxu0 0.0
        %317 = vmatpush1.msra.mxu0 0.0
        %318 = vmatprep.subr.mxu0 0.0
        %319 = vmatpush1.msra.mxu0 0.0
        %320 = vmatprep.subr.mxu0 0.0
        %321 = vmatpush1.msra.mxu0 0.0
        %322 = vmatprep.subr.mxu0 0.0
        %323 = vmatpush1.msra.mxu0 0.0
        %324 = vmatprep.subr.mxu0 0.0
        %325 = vmatpush1.msra.mxu0 0.0
        %326 = vmatprep.subr.mxu0 0.0
        %327 = vmatpush1.msra.mxu0 0.0
        %328 = vmatprep.subr.mxu0 0.0
        %329 = vmatpush1.msra.mxu0 0.0
        %330 = vmatprep.subr.mxu0 0.0
        %331 = vmatpush1.msra.mxu0 0.0
        %332 = vmatprep.subr.mxu0 0.0
        %333 = vmatpush1.msra.mxu0 0.0
        %334 = vmatprep.subr.mxu0 0.0
        %335 = vmatpush1.msra.mxu0 0.0
        %336 = vmatprep.subr.mxu0 0.0
        %337 = vmatpush1.msra.mxu0 0.0
        %338 = vmatprep.subr.mxu0 0.0
        %339 = vmatpush1.msra.mxu0 0.0
        %340 = vmatprep.subr.mxu0 0.0
        %341 = vmatpush1.msra.mxu0 0.0
        %342 = vmatprep.subr.mxu0 0.0
        %343 = vmatpush1.msra.mxu0 0.0
        %344 = vmatprep.subr.mxu0 0.0
        %345 = vmatpush1.msra.mxu0 0.0
        %346 = vmatprep.subr.mxu0 0.0
        %347 = vmatpush1.msra.mxu0 0.0
        %348 = vmatprep.subr.mxu0 0.0
        %349 = vmatpush1.msra.mxu0 0.0
        %350 = vmatprep.mubr.f32.mxu0 0.0
        %351 = vmatmul.mubr.f32.gmra.mrb[0].mxu0 %v281
        %v352 = vpop.f32.mrb[0].mxu0
        %v353 = vadd.f32 0.0, %v352
        %v354 = vpop.f32.mrb[0].mxu0
        %355 = vmatprep.mubr.f32.mxu0 0.0
        %356 = vmatmul.mubr.f32.gmra.mrb[0].mxu0 %v284
        %v357 = vpop.f32.mrb[0].mxu0
        %v358 = vadd.f32 0.0, %v357
        %v359 = vpop.f32.mrb[0].mxu0
        %360 = vdwg.mxu0
        %v361 = vadd.f32 %v271, %v353
        %v362 = vadd.f32 %v272, %v358
        %vm363 = vcmask 523264
        %364 = vst.msk [vmem:[#allocation2] sm:$0xff] %vm363, %v361
        %365 = vst.msk [vmem:[#allocation2 + $0x8] sm:$0xff] %vm363, %v362
        // Predicated region
        $region45: #{group_query_attn_forward.3} parent=31 // pred_check
          %p366 = pneg %p264
        $region46: #{group_query_attn_forward.3} parent=31 // pred_check_branch
          %368 = sbr.rel (%p366) target = $region48
        $region47: #{group_query_attn_forward.3} parent=31 // pred_region
          %v369 = vld [vmem:[#allocation2] sm:$0xff]
          %v370 = vld [vmem:[#allocation2 + $0x8] sm:$0xff]
          %v371 = vld [vmem:[%s254] sm:$0x1]
          %v373 = vlaneseq
          %v374 = vshrl.u32 %v373, 7
          %v375 = vsub.s32 0, %v374
          %v376 = vrot.slane %v371, %v375
          %v378 = vadd.f32 %v369, %v376
          %v379 = vadd.f32 %v370, %v376
          %380 = vst.msk [vmem:[%s262] sm:$0xff] %vm363, %v378
          %381 = vst.msk [vmem:[%s262 + $0x8] sm:$0xff] %vm363, %v379
        $region48: #{group_query_attn_forward.3} parent=31 // pred_fallthru
          _
        %s382 = smul.u32 2, %s23
        %p383 = scmp.lt.s32.totalorder %s382, 3
        %s384 = scalar_select %p383, %s382, 3
        %p385 = scmp.lt.s32.totalorder %s24, 0
        %s386 = scalar_select %p385, %s24, 0
        %s387 = sadd.s32 %s386, %s384
        %s388 = smul.addr %s387, 8
        %s389 = scalar_lea.vmem %s3, %s388
        // Predicated region
        $region49: #{group_query_attn_forward.3} parent=31 // pred_check
          %p390 = pneg %p139
        $region50: #{group_query_attn_forward.3} parent=31 // pred_check_branch
          %392 = sbr.rel (%p390) target = $region52
        $region51: #{group_query_attn_forward.3} parent=31 // pred_region
          %s393 = smul.u32 2, %s23
        $region52: #{group_query_attn_forward.3} parent=31 // pred_fallthru
          _
      $region32: #{group_query_attn_forward.3} parent=5 // pred_fallthru
        _
      %p394 = scmp.le.s32.totalorder 2, %s13
      // Predicated region
      $region53: #{group_query_attn_forward.3} parent=5 // pred_check
        %p395 = pneg %p394
      $region54: #{group_query_attn_forward.3} parent=5 // pred_check_branch
        %397 = sbr.rel (%p395) target = $region56
      $region55: #{group_query_attn_forward.3} parent=5 // pred_region
        %s398 = ssub.s32 %s13, 2
        // Predicated region
        $region57: #{group_query_attn_forward.3} parent=55 // pred_check
          %p399 = pneg %p145
        $region58: #{group_query_attn_forward.3} parent=55 // pred_check_branch
          %401 = sbr.rel (%p399) target = $region60
        $region59: #{group_query_attn_forward.3} parent=55 // pred_region
          %s402 = smul.u32 2, %s26
          %p403 = scmp.lt.s32.totalorder %s402, 3
          %s404 = scalar_select %p403, %s402, 3
          %p405 = scmp.lt.s32.totalorder %s27, 0
          %s406 = scalar_select %p405, %s27, 0
          %s407 = sadd.s32 %s406, %s404
          %s408 = smul.addr %s407, 8
          %s409 = scalar_lea.vmem %s3, %s408
        $region60: #{group_query_attn_forward.3} parent=55 // pred_fallthru
          _
      $region56: #{group_query_attn_forward.3} parent=5 // pred_fallthru
        _
    $region6: #{group_query_attn_forward.3} parent=1 // loop_footer
      %s17 = sadd.s32 1, %s13
    $region7: #{group_query_attn_forward.3} parent=1 // loop_footer_branch
      %12 = sbr.rel target = $region3
    $region8: #{group_query_attn_forward.3} parent=1 // loop_exit
      _
    %410 = vsyncpa [#allocation4], 1
    %s411 = scalar_lea.sflag [#allocation4], 1
    %412 = vsyncpa %s411, 1
    %413 = vsyncpa [#allocation6], 1

// kernel: group_query_attn_forward.5
$region0: #{group_query_attn_forward.5}
  #allocation0 [shape = 'u32[]', space=smem, size = 0x4, offset = 0x4, fixed_abs, tag = 'smem constant byte address 0x4 - core index']
  #allocation1 [shape = 'u32[144,128]{1,0:T(1,128)}', space=vmem, size = 0x12000, scoped, tag = 'internal scratch']
  #allocation2 [shape = 'f32[16,32]{1,0:T(8,128)}', space=vmem, size = 0x2000, scoped, tag = 'scratch operand']
  %s0 = inlined_call_operand.vmem [shape: f32[32,32], index: 0, kind: input, shape index: {}]
  %s1 = inlined_call_operand.vmem [shape: f32[32,32], index: 1, kind: input, shape index: {}]
  %s2 = inlined_call_operand.vmem [shape: f32[1,32], index: 2, kind: input, shape index: {}]
  %s3 = inlined_call_operand.hbm [shape: f32[32,32], index: 3, kind: output, shape index: {}]
  %s4 = sld [smem:[#allocation0]]
  $region53: #{group_query_attn_forward.5} parent=0
    _
  %s6 = ssub.s32 1, %s4
  %s7 = scalar_select 0, %s6, %s4
  $region1: #{group_query_attn_forward.5} parent=0
    #allocation3 [shape = 'u8[16384]{0}', space=vmem, size = 0x4000, scoped, tag = 'output window, operand 0']
    #allocation4 [shape = 's32[2]{0}', space=sflag, size = 0x8, scoped, tag = 'scoped memory for group_query_attn_forward.5']
    %8 = vsyncpa [#allocation4], 0
    %s9 = scalar_lea.sflag [#allocation4], 1
    %10 = vsyncpa %s9, 0
    loop: start=0, step=1, limit=4
    $region2: #{group_query_attn_forward.5} parent=1 // loop_pre_header
      _
    $region3: #{group_query_attn_forward.5} parent=1 // loop_header
      %s12 = sphi 0, %s16
      %p13 = scmp.ge.s32.totalorder %s12, 4
      %s19 = sphi 0, %s38
      %s20 = sphi 0, %s34
      %s21 = sphi 0, %s30
      %s22 = sphi 0, %s19
      %s23 = sphi 0, %s20
      %s24 = sphi 0, %s21
      %s25 = sphi 0, %s22
      %s26 = sphi 0, %s23
      %s27 = sphi 0, %s24
      %s43 = sphi 0, %s45
      %s46 = sphi 0, %s43
      %s47 = sphi 0, %s46
      %s63 = sphi 0, %s47
      %s71 = sphi 0, %s73
      %s74 = sphi 0, %s71
      %s75 = sphi 0, %s74
      %s91 = sphi 0, %s75
      %s97 = sphi 0, %s99
      %s100 = sphi 0, %s97
      %s101 = sphi 0, %s100
      %s117 = sphi 0, %s101
      %s125 = sphi 0, %s127
      %s128 = sphi 0, %s125
      %s129 = sphi 0, %s128
      %s145 = sphi 0, %s129
    $region4: #{group_query_attn_forward.5} parent=1 // loop_header_branch
      %15 = sbr.rel (%p13) target = $region8
    $region5: #{group_query_attn_forward.5} parent=1 // loop_body
      %s17 = ssub.s32 %s12, 1
      %s18 = ssub.s32 %s12, 2
      %s28 = sadd.s32 1, %s21
      %p29 = scmp.ge.s32.totalorder %s28, 1
      %s30 = scalar_select %p29, 0, %s28
      %s31 = sadd.s32 1, %s20
      %s32 = scalar_select %p29, %s31, %s20
      %p33 = scmp.ge.s32.totalorder %s32, 1
      %s34 = scalar_select %p33, 0, %s32
      %s35 = sadd.s32 1, %s19
      %s36 = scalar_select %p33, %s35, %s19
      %p37 = scmp.ge.s32.totalorder %s36, 2
      %s38 = scalar_select %p37, 0, %s36
      %s39 = ssub.s32 %s19, %s38
      %s40 = ssub.s32 %s21, %s30
      %s41 = sor.u32 %s39, %s40
      %p42 = scmp.eq.s32.totalorder %s41, 0
      %s44 = sadd.s32 %s43, 1
      %s45 = scalar_select %p42, %s43, %s44
      %p48 = pneg %p42
      %p49 = scmp.eq.s32.totalorder %s12, 1
      %p50 = por %p48, %p49
      %p51 = scmp.ne.s32.totalorder %s43, %s46
      %p52 = scmp.eq.s32.totalorder %s12, 0
      %p53 = por %p51, %p52
      %p54 = scmp.ne.s32.totalorder %s43, %s46
      %p55 = scmp.eq.s32.totalorder %s17, 1
      %p56 = por %p54, %p55
      %p57 = scmp.ne.s32.totalorder %s46, %s47
      %p58 = scmp.eq.s32.totalorder %s17, 0
      %p59 = por %p57, %p58
      %p60 = scmp.ne.s32.totalorder %s46, %s47
      %p61 = scmp.eq.s32.totalorder %s18, 1
      %p62 = por %p60, %p61
      %p64 = scmp.ne.s32.totalorder %s47, %s63
      %p65 = scmp.eq.s32.totalorder %s18, 0
      %p66 = por %p64, %p65
      %s67 = ssub.s32 %s21, %s30
      %s68 = ssub.s32 %s20, %s34
      %s69 = sor.u32 %s67, %s68
      %p70 = scmp.eq.s32.totalorder %s69, 0
      %s72 = sadd.s32 %s71, 1
      %s73 = scalar_select %p70, %s71, %s72
      %p76 = pneg %p70
      %p77 = scmp.eq.s32.totalorder %s12, 1
      %p78 = por %p76, %p77
      %p79 = scmp.ne.s32.totalorder %s71, %s74
      %p80 = scmp.eq.s32.totalorder %s12, 0
      %p81 = por %p79, %p80
      %p82 = scmp.ne.s32.totalorder %s71, %s74
      %p83 = scmp.eq.s32.totalorder %s17, 1
      %p84 = por %p82, %p83
      %p85 = scmp.ne.s32.totalorder %s74, %s75
      %p86 = scmp.eq.s32.totalorder %s17, 0
      %p87 = por %p85, %p86
      %p88 = scmp.ne.s32.totalorder %s74, %s75
      %p89 = scmp.eq.s32.totalorder %s18, 1
      %p90 = por %p88, %p89
      %p92 = scmp.ne.s32.totalorder %s75, %s91
      %p93 = scmp.eq.s32.totalorder %s18, 0
      %p94 = por %p92, %p93
      %s95 = ssub.s32 %s20, %s34
      %p96 = scmp.eq.s32.totalorder %s95, 0
      %s98 = sadd.s32 %s97, 1
      %s99 = scalar_select %p96, %s97, %s98
      %p102 = pneg %p96
      %p103 = scmp.eq.s32.totalorder %s12, 1
      %p104 = por %p102, %p103
      %p105 = scmp.ne.s32.totalorder %s97, %s100
      %p106 = scmp.eq.s32.totalorder %s12, 0
      %p107 = por %p105, %p106
      %p108 = scmp.ne.s32.totalorder %s97, %s100
      %p109 = scmp.eq.s32.totalorder %s17, 1
      %p110 = por %p108, %p109
      %p111 = scmp.ne.s32.totalorder %s100, %s101
      %p112 = scmp.eq.s32.totalorder %s17, 0
      %p113 = por %p111, %p112
      %p114 = scmp.ne.s32.totalorder %s100, %s101
      %p115 = scmp.eq.s32.totalorder %s18, 1
      %p116 = por %p114, %p115
      %p118 = scmp.ne.s32.totalorder %s101, %s117
      %p119 = scmp.eq.s32.totalorder %s18, 0
      %p120 = por %p118, %p119
      %s121 = ssub.s32 %s19, %s38
      %s122 = ssub.s32 %s20, %s34
      %s123 = sor.u32 %s121, %s122
      %p124 = scmp.eq.s32.totalorder %s123, 0
      %s126 = sadd.s32 %s125, 1
      %s127 = scalar_select %p124, %s125, %s126
      %p130 = pneg %p124
      %p131 = scmp.eq.s32.totalorder %s12, 1
      %p132 = por %p130, %p131
      %p133 = scmp.ne.s32.totalorder %s125, %s128
      %p134 = scmp.eq.s32.totalorder %s12, 0
      %p135 = por %p133, %p134
      %p136 = scmp.ne.s32.totalorder %s125, %s128
      %p137 = scmp.eq.s32.totalorder %s17, 1
      %p138 = por %p136, %p137
      %p139 = scmp.ne.s32.totalorder %s128, %s129
      %p140 = scmp.eq.s32.totalorder %s17, 0
      %p141 = por %p139, %p140
      %p142 = scmp.ne.s32.totalorder %s128, %s129
      %p143 = scmp.eq.s32.totalorder %s18, 1
      %p144 = por %p142, %p143
      %p146 = scmp.ne.s32.totalorder %s129, %s145
      %p147 = scmp.eq.s32.totalorder %s18, 0
      %p148 = por %p146, %p147
      %p149 = scmp.le.s32.totalorder 1, %s12
      %p150 = scmp.lt.s32.totalorder %s12, 3
      %p151 = pnand %p149, %p150
      %p152 = pneg %p151
      // Predicated region
      $region9: #{group_query_attn_forward.5} parent=5 // pred_check
        _
      $region10: #{group_query_attn_forward.5} parent=5 // pred_check_branch
        %154 = sbr.rel (%p151) target = $region12
      $region11: #{group_query_attn_forward.5} parent=5 // pred_region
        %s155 = ssub.s32 %s12, 1
        // Predicated region
        $region13: #{group_query_attn_forward.5} parent=11 // pred_check
          %p156 = pneg %p87
        $region14: #{group_query_attn_forward.5} parent=11 // pred_check_branch
          %158 = sbr.rel (%p156) target = $region16
        $region15: #{group_query_attn_forward.5} parent=11 // pred_region
          %s159 = smul.u32 4, %s24
          %p160 = scmp.lt.s32.totalorder %s159, 3
          %s161 = scalar_select %p160, %s159, 3
          %p162 = scmp.lt.s32.totalorder %s23, 0
          %s163 = scalar_select %p162, %s23, 0
          %s164 = sadd.s32 %s163, %s161
          %s165 = smul.addr %s164, 8
          %s166 = scalar_lea.vmem %s1, %s165
          %s167 = smul.u32 4, %s24
        $region16: #{group_query_attn_forward.5} parent=11 // pred_fallthru
          _
        // Predicated region
        $region17: #{group_query_attn_forward.5} parent=11 // pred_check
          %p168 = pneg %p113
        $region18: #{group_query_attn_forward.5} parent=11 // pred_check_branch
          %170 = sbr.rel (%p168) target = $region20
        $region19: #{group_query_attn_forward.5} parent=11 // pred_region
          %p171 = scmp.lt.s32.totalorder %s23, 0
          %s172 = scalar_select %p171, %s23, 0
          %s173 = scalar_lea.vmem %s2, %s172
        $region20: #{group_query_attn_forward.5} parent=11 // pred_fallthru
          _
      $region12: #{group_query_attn_forward.5} parent=5 // pred_fallthru
        _
      %p174 = scmp.lt.s32.totalorder %s12, 2
      // Predicated region
      $region21: #{group_query_attn_forward.5} parent=5 // pred_check
        %p175 = pneg %p174
      $region22: #{group_query_attn_forward.5} parent=5 // pred_check_branch
        %177 = sbr.rel (%p175) target = $region24
      $region23: #{group_query_attn_forward.5} parent=5 // pred_region
        // Predicated region
        $region25: #{group_query_attn_forward.5} parent=23 // pred_check
          %p178 = pneg %p53
        $region26: #{group_query_attn_forward.5} parent=23 // pred_check_branch
          %180 = sbr.rel (%p178) target = $region28
        $region27: #{group_query_attn_forward.5} parent=23 // pred_region
          %s181 = smul.u32 2, %s19
          %p182 = scmp.lt.s32.totalorder %s181, 3
          %s183 = scalar_select %p182, %s181, 3
          %p184 = scmp.lt.s32.totalorder %s21, 0
          %s185 = scalar_select %p184, %s21, 0
          %s186 = sadd.s32 %s185, %s183
          %s187 = smul.addr %s186, 8
          %s188 = scalar_lea.vmem %s0, %s187
          %s189 = smul.u32 2, %s19
        $region28: #{group_query_attn_forward.5} parent=23 // pred_fallthru
          _
      $region24: #{group_query_attn_forward.5} parent=5 // pred_fallthru
        _
      %p190 = scmp.le.s32.totalorder 1, %s12
      %p191 = scmp.lt.s32.totalorder %s12, 3
      %p192 = pnand %p190, %p191
      %p193 = pneg %p192
      // Predicated region
      $region29: #{group_query_attn_forward.5} parent=5 // pred_check
        _
      $region30: #{group_query_attn_forward.5} parent=5 // pred_check_branch
        %195 = sbr.rel (%p192) target = $region32
      $region31: #{group_query_attn_forward.5} parent=5 // pred_region
        %s196 = ssub.s32 %s12, 1
        %s197 = smul.u32 2, %s22
        %p198 = scmp.lt.s32.totalorder %s197, 3
        %s199 = scalar_select %p198, %s197, 3
        %p200 = scmp.lt.s32.totalorder %s24, 0
        %s201 = scalar_select %p200, %s24, 0
        %s202 = sadd.s32 %s201, %s199
        %s203 = smul.addr %s202, 8
        %s204 = scalar_lea.vmem %s0, %s203
        %p205 = pneg %p59
        %p206 = pneg %p56
        %s207 = smul.u32 4, %s24
        %p208 = scmp.lt.s32.totalorder %s207, 3
        %s209 = scalar_select %p208, %s207, 3
        %p210 = scmp.lt.s32.totalorder %s23, 0
        %s211 = scalar_select %p210, %s23, 0
        %s212 = sadd.s32 %s211, %s209
        %s213 = smul.addr %s212, 8
        %s214 = scalar_lea.vmem %s1, %s213
        %p215 = pneg %p87
        %p216 = pneg %p84
        %p217 = scmp.lt.s32.totalorder %s23, 0
        %s218 = scalar_select %p217, %s23, 0
        %s219 = scalar_lea.vmem %s2, %s218
        %p220 = pneg %p113
        %p221 = pneg %p110
        %p222 = pneg %p141
        %p223 = pneg %p138
        %s224 = sand.u32 %s128, 1
        %s225 = scalar_lea.sflag [#allocation4], %s224
        %s226 = sand.u32 %s128, 1
        %s227 = smul.addr %s226, 16
        %s228 = scalar_lea.vmem [#allocation3], %s227
        %s229 = smul.u32 2, %s22
        %p230 = scmp.lt.s32.totalorder %s229, 3
        %s231 = scalar_select %p230, %s229, 3
        %p232 = scmp.lt.s32.totalorder %s24, 0
        %s233 = scalar_select %p232, %s24, 0
        %s234 = sadd.s32 %s233, %s231
        %s235 = smul.addr %s234, 8
        %s236 = scalar_lea.vmem %s0, %s235
        %s237 = smul.u32 2, %s22
        %s238 = smul.u32 4, %s24
        %p239 = scmp.lt.s32.totalorder %s238, 3
        %s240 = scalar_select %p239, %s238, 3
        %p241 = scmp.lt.s32.totalorder %s23, 0
        %s242 = scalar_select %p241, %s23, 0
        %s243 = sadd.s32 %s242, %s240
        %s244 = smul.addr %s243, 8
        %s245 = scalar_lea.vmem %s1, %s244
        %s246 = smul.u32 4, %s24
        %p247 = scmp.lt.s32.totalorder %s23, 0
        %s248 = scalar_select %p247, %s23, 0
        %s249 = scalar_lea.vmem %s2, %s248
        %s250 = smul.u32 2, %s22
        %p251 = scmp.eq.s32.totalorder %s24, 0
        // Predicated region
        $region33: #{group_query_attn_forward.5} parent=31 // pred_check
          %p252 = pneg %p251
        $region34: #{group_query_attn_forward.5} parent=31 // pred_check_branch
          %254 = sbr.rel (%p252) target = $region36
        $region35: #{group_query_attn_forward.5} parent=31 // pred_region
          %vm255 = vcmask 261120
          %256 = vst.msk [vmem:[#allocation2] sm:$0xff] %vm255, 0.0
          %257 = vst.msk [vmem:[#allocation2 + $0x8] sm:$0xff] %vm255, 0.0
        $region36: #{group_query_attn_forward.5} parent=31 // pred_fallthru
          _
        %v258 = vld [vmem:[#allocation2] sm:$0xff]
        %v259 = vld [vmem:[#allocation2 + $0x8] sm:$0xff]
        %v260 = vld [vmem:[%s236] sm:$0xff]
        %v261 = vld [vmem:[%s236 + $0x8] sm:$0xff]
        %v262 = vld [vmem:[%s245] sm:$0xff]
        %v263 = vld [vmem:[%s245 + $0x8] sm:$0xff]
        %v264 = vld [vmem:[%s245 + $0x10] sm:$0xff]
        %v265 = vld [vmem:[%s245 + $0x18] sm:$0xff]
        %vm266 = vcmask 261120
        %v268 = vsel %vm266, %v260, 0
        %v271 = vsel %vm266, %v261, 0
        %273 = vmatprep.subr.mxu0 0.0
        %274 = vmatpush1.msra.mxu0 %v262
        %275 = vmatprep.subr.mxu0 0.0
        %276 = vmatpush1.msra.mxu0 %v263
        %277 = vmatprep.subr.mxu0 0.0
        %278 = vmatpush1.msra.mxu0 %v264
        %279 = vmatprep.subr.mxu0 0.0
        %280 = vmatpush1.msra.mxu0 %v265
        %281 = vmatprep.subr.mxu0 0.0
        %282 = vmatpush1.msra.mxu0 0.0
        %283 = vmatprep.subr.mxu0 0.0
        %284 = vmatpush1.msra.mxu0 0.0
        %285 = vmatprep.subr.mxu0 0.0
        %286 = vmatpush1.msra.mxu0 0.0
        %287 = vmatprep.subr.mxu0 0.0
        %288 = vmatpush1.msra.mxu0 0.0
        %289 = vmatprep.subr.mxu0 0.0
        %290 = vmatpush1.msra.mxu0 0.0
        %291 = vmatprep.subr.mxu0 0.0
        %292 = vmatpush1.msra.mxu0 0.0
        %293 = vmatprep.subr.mxu0 0.0
        %294 = vmatpush1.msra.mxu0 0.0
        %295 = vmatprep.subr.mxu0 0.0
        %296 = vmatpush1.msra.mxu0 0.0
        %297 = vmatprep.subr.mxu0 0.0
        %298 = vmatpush1.msra.mxu0 0.0
        %299 = vmatprep.subr.mxu0 0.0
        %300 = vmatpush1.msra.mxu0 0.0
        %301 = vmatprep.subr.mxu0 0.0
        %302 = vmatpush1.msra.mxu0 0.0
        %303 = vmatprep.subr.mxu0 0.0
        %304 = vmatpush1.msra.mxu0 0.0
        %305 = vmatprep.subr.mxu0 0.0
        %306 = vmatpush1.msra.mxu0 0.0
        %307 = vmatprep.subr.mxu0 0.0
        %308 = vmatpush1.msra.mxu0 0.0
        %309 = vmatprep.subr.mxu0 0.0
        %310 = vmatpush1.msra.mxu0 0.0
        %311 = vmatprep.subr.mxu0 0.0
        %312 = vmatpush1.msra.mxu0 0.0
        %313 = vmatprep.subr.mxu0 0.0
        %314 = vmatpush1.msra.mxu0 0.0
        %315 = vmatprep.subr.mxu0 0.0
        %316 = vmatpush1.msra.mxu0 0.0
        %317 = vmatprep.subr.mxu0 0.0
        %318 = vmatpush1.msra.mxu0 0.0
        %319 = vmatprep.subr.mxu0 0.0
        %320 = vmatpush1.msra.mxu0 0.0
        %321 = vmatprep.subr.mxu0 0.0
        %322 = vmatpush1.msra.mxu0 0.0
        %323 = vmatprep.subr.mxu0 0.0
        %324 = vmatpush1.msra.mxu0 0.0
        %325 = vmatprep.subr.mxu0 0.0
        %326 = vmatpush1.msra.mxu0 0.0
        %327 = vmatprep.subr.mxu0 0.0
        %328 = vmatpush1.msra.mxu0 0.0
        %329 = vmatprep.subr.mxu0 0.0
        %330 = vmatpush1.msra.mxu0 0.0
        %331 = vmatprep.subr.mxu0 0.0
        %332 = vmatpush1.msra.mxu0 0.0
        %333 = vmatprep.subr.mxu0 0.0
        %334 = vmatpush1.msra.mxu0 0.0
        %335 = vmatprep.subr.mxu0 0.0
        %336 = vmatpush1.msra.mxu0 0.0
        %337 = vmatprep.mubr.f32.mxu0 0.0
        %338 = vmatmul.mubr.f32.gmra.mrb[0].mxu0 %v268
        %v339 = vpop.f32.mrb[0].mxu0
        %v340 = vadd.f32 0.0, %v339
        %v341 = vpop.f32.mrb[0].mxu0
        %342 = vmatprep.mubr.f32.mxu0 0.0
        %343 = vmatmul.mubr.f32.gmra.mrb[0].mxu0 %v271
        %v344 = vpop.f32.mrb[0].mxu0
        %v345 = vadd.f32 0.0, %v344
        %v346 = vpop.f32.mrb[0].mxu0
        %347 = vdwg.mxu0
        %v348 = vadd.f32 %v258, %v340
        %v349 = vadd.f32 %v259, %v345
        %350 = vst.msk [vmem:[#allocation2] sm:$0xff] %vm266, %v348
        %351 = vst.msk [vmem:[#allocation2 + $0x8] sm:$0xff] %vm266, %v349
        // Predicated region
        $region37: #{group_query_attn_forward.5} parent=31 // pred_check
          %p352 = pneg %p251
        $region38: #{group_query_attn_forward.5} parent=31 // pred_check_branch
          %354 = sbr.rel (%p352) target = $region40
        $region39: #{group_query_attn_forward.5} parent=31 // pred_region
          %v355 = vld [vmem:[#allocation2] sm:$0xff]
          %v356 = vld [vmem:[#allocation2 + $0x8] sm:$0xff]
          %v357 = vld [vmem:[%s249] sm:$0x1]
          %v359 = vlaneseq
          %v360 = vshrl.u32 %v359, 7
          %v361 = vsub.s32 0, %v360
          %v362 = vrot.slane %v357, %v361
          %v364 = vadd.f32 %v355, %v362
          %v365 = vadd.f32 %v356, %v362
          %366 = vst.msk [vmem:[%s228] sm:$0xff] %vm266, %v364
          %367 = vst.msk [vmem:[%s228 + $0x8] sm:$0xff] %vm266, %v365
        $region40: #{group_query_attn_forward.5} parent=31 // pred_fallthru
          _
        %s368 = sand.u32 %s128, 1
        %s369 = scalar_lea.sflag [#allocation4], %s368
        %s370 = sand.u32 %s128, 1
        %s371 = smul.addr %s370, 16
        %s372 = scalar_lea.vmem [#allocation3], %s371
        // Predicated region
        $region41: #{group_query_attn_forward.5} parent=31 // pred_check
          %p373 = pneg %p138
        $region42: #{group_query_attn_forward.5} parent=31 // pred_check_branch
          %375 = sbr.rel (%p373) target = $region44
        $region43: #{group_query_attn_forward.5} parent=31 // pred_region
          %s376 = smul.u32 2, %s22
          %s378 = ssub.s32 256, 256
          %379 = vsyncadd %s369, %s378
          %s380 = sadd.s32 %s23, %s376
          %s381 = smul.addr %s380, 128
          %s382 = scalar_lea.hbm %s3, %s381
          %s383 = sshll.u32 %s372, 4
          %s384 = int_to_ptr.vmem [resolvable:$true] %s383
          %389 = dma.vmem_to_hbm [thread:$0]  %s384, 256, %s382, %s369, 128, 128, 8
        $region44: #{group_query_attn_forward.5} parent=31 // pred_fallthru
          _
      $region32: #{group_query_attn_forward.5} parent=5 // pred_fallthru
        _
      %p390 = scmp.le.s32.totalorder 2, %s12
      // Predicated region
      $region45: #{group_query_attn_forward.5} parent=5 // pred_check
        %p391 = pneg %p390
      $region46: #{group_query_attn_forward.5} parent=5 // pred_check_branch
        %393 = sbr.rel (%p391) target = $region48
      $region47: #{group_query_attn_forward.5} parent=5 // pred_region
        %s394 = ssub.s32 %s12, 2
        // Predicated region
        $region49: #{group_query_attn_forward.5} parent=47 // pred_check
          %p395 = pneg %p144
        $region50: #{group_query_attn_forward.5} parent=47 // pred_check_branch
          %397 = sbr.rel (%p395) target = $region52
        $region51: #{group_query_attn_forward.5} parent=47 // pred_region
          %s398 = sand.u32 %s129, 1
          %s399 = scalar_lea.sflag [#allocation4], %s398
          %s400 = sand.u32 %s129, 1
          %s401 = smul.addr %s400, 16
          %s402 = scalar_lea.vmem [#allocation3], %s401
          %403 = dma.done %s399, 256
        $region52: #{group_query_attn_forward.5} parent=47 // pred_fallthru
          _
      $region48: #{group_query_attn_forward.5} parent=5 // pred_fallthru
        _
    $region6: #{group_query_attn_forward.5} parent=1 // loop_footer
      %s16 = sadd.s32 1, %s12
    $region7: #{group_query_attn_forward.5} parent=1 // loop_footer_branch
      %11 = sbr.rel target = $region3
    $region8: #{group_query_attn_forward.5} parent=1 // loop_exit
      _
    %404 = vsyncpa [#allocation4], 1
    %s405 = scalar_lea.sflag [#allocation4], 1
    %406 = vsyncpa %s405, 1

// kernel: group_query_attn_forward.4
$region0: #{group_query_attn_forward.4}
  #allocation0 [shape = 'u32[]', space=smem, size = 0x4, offset = 0x4, fixed_abs, tag = 'smem constant byte address 0x4 - core index']
  #allocation1 [shape = 'u32[144,128]{1,0:T(1,128)}', space=vmem, size = 0x12000, scoped, tag = 'internal scratch']
  #allocation2 [shape = 'f32[16,1]{1,0:T(8,128)}', space=vmem, size = 0x2000, scoped, tag = 'scratch operand']
  #allocation3 [shape = 'f32[16,1]{1,0:T(8,128)}', space=vmem, size = 0x2000, scoped, tag = 'scratch operand']
  #allocation4 [shape = 'f32[16,8]{1,0:T(8,128)}', space=vmem, size = 0x2000, scoped, tag = 'scratch operand']
  %s0 = inlined_call_operand.vmem [shape: f32[2,2,32,8], index: 0, kind: input, shape index: {}]
  %s1 = inlined_call_operand.vmem [shape: f32[2,2,16,8], index: 1, kind: input, shape index: {}]
  %s2 = inlined_call_operand.vmem [shape: f32[2,2,16,8], index: 2, kind: input, shape index: {}]
  %s3 = inlined_call_operand.vmem [shape: f32[2,2,32,8], index: 3, kind: output, shape index: {}]
  %s4 = sld [smem:[#allocation0]]
  $region53: #{group_query_attn_forward.4} parent=0
    _
  %s6 = ssub.s32 1, %s4
  %s7 = scalar_select 0, %s6, %s4
  loop: start=0, step=1, limit=18
  $region2: #{group_query_attn_forward.4} parent=0 // loop_pre_header
    _
  $region3: #{group_query_attn_forward.4} parent=0 // loop_header
    %s9 = sphi 0, %s13
    %p10 = scmp.ge.s32.totalorder %s9, 18
    %s16 = sphi 0, %s42
    %s17 = sphi 0, %s38
    %s18 = sphi 0, %s34
    %s19 = sphi 0, %s30
    %s20 = sphi 0, %s16
    %s21 = sphi 0, %s17
    %s22 = sphi 0, %s18
    %s23 = sphi 0, %s19
    %s24 = sphi 0, %s20
    %s25 = sphi 0, %s21
    %s26 = sphi 0, %s22
    %s27 = sphi 0, %s23
    %s49 = sphi 0, %s51
    %s52 = sphi 0, %s49
    %s53 = sphi 0, %s52
    %s69 = sphi 0, %s53
    %s79 = sphi 0, %s81
    %s82 = sphi 0, %s79
    %s83 = sphi 0, %s82
    %s99 = sphi 0, %s83
    %s109 = sphi 0, %s111
    %s112 = sphi 0, %s109
    %s113 = sphi 0, %s112
    %s129 = sphi 0, %s113
    %s139 = sphi 0, %s141
    %s142 = sphi 0, %s139
    %s143 = sphi 0, %s142
    %s159 = sphi 0, %s143
  $region4: #{group_query_attn_forward.4} parent=0 // loop_header_branch
    %12 = sbr.rel (%p10) target = $region8
  $region5: #{group_query_attn_forward.4} parent=0 // loop_body
    %s14 = ssub.s32 %s9, 1
    %s15 = ssub.s32 %s9, 2
    %s28 = sadd.s32 1, %s19
    %p29 = scmp.ge.s32.totalorder %s28, 2
    %s30 = scalar_select %p29, 0, %s28
    %s31 = sadd.s32 1, %s18
    %s32 = scalar_select %p29, %s31, %s18
    %p33 = scmp.ge.s32.totalorder %s32, 2
    %s34 = scalar_select %p33, 0, %s32
    %s35 = sadd.s32 1, %s17
    %s36 = scalar_select %p33, %s35, %s17
    %p37 = scmp.ge.s32.totalorder %s36, 2
    %s38 = scalar_select %p37, 0, %s36
    %s39 = sadd.s32 1, %s16
    %s40 = scalar_select %p37, %s39, %s16
    %p41 = scmp.ge.s32.totalorder %s40, 2
    %s42 = scalar_select %p41, 0, %s40
    %s43 = ssub.s32 %s16, %s42
    %s44 = ssub.s32 %s17, %s38
    %s45 = sor.u32 %s43, %s44
    %s46 = ssub.s32 %s18, %s34
    %s47 = sor.u32 %s45, %s46
    %p48 = scmp.eq.s32.totalorder %s47, 0
    %s50 = sadd.s32 %s49, 1
    %s51 = scalar_select %p48, %s49, %s50
    %p54 = pneg %p48
    %p55 = scmp.eq.s32.totalorder %s9, 15
    %p56 = por %p54, %p55
    %p57 = scmp.ne.s32.totalorder %s49, %s52
    %p58 = scmp.eq.s32.totalorder %s9, 0
    %p59 = por %p57, %p58
    %p60 = scmp.ne.s32.totalorder %s49, %s52
    %p61 = scmp.eq.s32.totalorder %s14, 15
    %p62 = por %p60, %p61
    %p63 = scmp.ne.s32.totalorder %s52, %s53
    %p64 = scmp.eq.s32.totalorder %s14, 0
    %p65 = por %p63, %p64
    %p66 = scmp.ne.s32.totalorder %s52, %s53
    %p67 = scmp.eq.s32.totalorder %s15, 15
    %p68 = por %p66, %p67
    %p70 = scmp.ne.s32.totalorder %s53, %s69
    %p71 = scmp.eq.s32.totalorder %s15, 0
    %p72 = por %p70, %p71
    %s73 = ssub.s32 %s16, %s42
    %s74 = ssub.s32 %s17, %s38
    %s75 = sor.u32 %s73, %s74
    %s76 = ssub.s32 %s19, %s30
    %s77 = sor.u32 %s75, %s76
    %p78 = scmp.eq.s32.totalorder %s77, 0
    %s80 = sadd.s32 %s79, 1
    %s81 = scalar_select %p78, %s79, %s80
    %p84 = pneg %p78
    %p85 = scmp.eq.s32.totalorder %s9, 15
    %p86 = por %p84, %p85
    %p87 = scmp.ne.s32.totalorder %s79, %s82
    %p88 = scmp.eq.s32.totalorder %s9, 0
    %p89 = por %p87, %p88
    %p90 = scmp.ne.s32.totalorder %s79, %s82
    %p91 = scmp.eq.s32.totalorder %s14, 15
    %p92 = por %p90, %p91
    %p93 = scmp.ne.s32.totalorder %s82, %s83
    %p94 = scmp.eq.s32.totalorder %s14, 0
    %p95 = por %p93, %p94
    %p96 = scmp.ne.s32.totalorder %s82, %s83
    %p97 = scmp.eq.s32.totalorder %s15, 15
    %p98 = por %p96, %p97
    %p100 = scmp.ne.s32.totalorder %s83, %s99
    %p101 = scmp.eq.s32.totalorder %s15, 0
    %p102 = por %p100, %p101
    %s103 = ssub.s32 %s16, %s42
    %s104 = ssub.s32 %s17, %s38
    %s105 = sor.u32 %s103, %s104
    %s106 = ssub.s32 %s19, %s30
    %s107 = sor.u32 %s105, %s106
    %p108 = scmp.eq.s32.totalorder %s107, 0
    %s110 = sadd.s32 %s109, 1
    %s111 = scalar_select %p108, %s109, %s110
    %p114 = pneg %p108
    %p115 = scmp.eq.s32.totalorder %s9, 15
    %p116 = por %p114, %p115
    %p117 = scmp.ne.s32.totalorder %s109, %s112
    %p118 = scmp.eq.s32.totalorder %s9, 0
    %p119 = por %p117, %p118
    %p120 = scmp.ne.s32.totalorder %s109, %s112
    %p121 = scmp.eq.s32.totalorder %s14, 15
    %p122 = por %p120, %p121
    %p123 = scmp.ne.s32.totalorder %s112, %s113
    %p124 = scmp.eq.s32.totalorder %s14, 0
    %p125 = por %p123, %p124
    %p126 = scmp.ne.s32.totalorder %s112, %s113
    %p127 = scmp.eq.s32.totalorder %s15, 15
    %p128 = por %p126, %p127
    %p130 = scmp.ne.s32.totalorder %s113, %s129
    %p131 = scmp.eq.s32.totalorder %s15, 0
    %p132 = por %p130, %p131
    %s133 = ssub.s32 %s16, %s42
    %s134 = ssub.s32 %s17, %s38
    %s135 = sor.u32 %s133, %s134
    %s136 = ssub.s32 %s18, %s34
    %s137 = sor.u32 %s135, %s136
    %p138 = scmp.eq.s32.totalorder %s137, 0
    %s140 = sadd.s32 %s139, 1
    %s141 = scalar_select %p138, %s139, %s140
    %p144 = pneg %p138
    %p145 = scmp.eq.s32.totalorder %s9, 15
    %p146 = por %p144, %p145
    %p147 = scmp.ne.s32.totalorder %s139, %s142
    %p148 = scmp.eq.s32.totalorder %s9, 0
    %p149 = por %p147, %p148
    %p150 = scmp.ne.s32.totalorder %s139, %s142
    %p151 = scmp.eq.s32.totalorder %s14, 15
    %p152 = por %p150, %p151
    %p153 = scmp.ne.s32.totalorder %s142, %s143
    %p154 = scmp.eq.s32.totalorder %s14, 0
    %p155 = por %p153, %p154
    %p156 = scmp.ne.s32.totalorder %s142, %s143
    %p157 = scmp.eq.s32.totalorder %s15, 15
    %p158 = por %p156, %p157
    %p160 = scmp.ne.s32.totalorder %s143, %s159
    %p161 = scmp.eq.s32.totalorder %s15, 0
    %p162 = por %p160, %p161
    %p163 = scmp.le.s32.totalorder 1, %s9
    %p164 = scmp.lt.s32.totalorder %s9, 17
    %p165 = pnand %p163, %p164
    %p166 = pneg %p165
    // Predicated region
    $region9: #{group_query_attn_forward.4} parent=5 // pred_check
      _
    $region10: #{group_query_attn_forward.4} parent=5 // pred_check_branch
      %168 = sbr.rel (%p165) target = $region12
    $region11: #{group_query_attn_forward.4} parent=5 // pred_region
      %s169 = ssub.s32 %s9, 1
    $region12: #{group_query_attn_forward.4} parent=5 // pred_fallthru
      _
    %p170 = scmp.lt.s32.totalorder %s9, 16
    // Predicated region
    $region13: #{group_query_attn_forward.4} parent=5 // pred_check
      %p171 = pneg %p170
    $region14: #{group_query_attn_forward.4} parent=5 // pred_check_branch
      %173 = sbr.rel (%p171) target = $region16
    $region15: #{group_query_attn_forward.4} parent=5 // pred_region
      // Predicated region
      $region17: #{group_query_attn_forward.4} parent=15 // pred_check
        %p174 = pneg %p59
      $region18: #{group_query_attn_forward.4} parent=15 // pred_check_branch
        %176 = sbr.rel (%p174) target = $region20
      $region19: #{group_query_attn_forward.4} parent=15 // pred_region
        %s177 = smul.u32 2, %s18
        %p178 = scmp.lt.s32.totalorder %s16, 1
        %s179 = scalar_select %p178, %s16, 1
        %p180 = scmp.lt.s32.totalorder %s17, 1
        %s181 = scalar_select %p180, %s17, 1
        %p182 = scmp.lt.s32.totalorder %s177, 3
        %s183 = scalar_select %p182, %s177, 3
        %s184 = smul.addr %s181, 4
        %s185 = sadd.s32 %s183, %s184
        %s186 = smul.addr %s179, 8
        %s187 = sadd.s32 %s185, %s186
        %s188 = smul.addr %s187, 8
        %s189 = scalar_lea.vmem %s0, %s188
        %s190 = smul.u32 2, %s18
      $region20: #{group_query_attn_forward.4} parent=15 // pred_fallthru
        _
      // Predicated region
      $region21: #{group_query_attn_forward.4} parent=15 // pred_check
        %p191 = pneg %p89
      $region22: #{group_query_attn_forward.4} parent=15 // pred_check_branch
        %193 = sbr.rel (%p191) target = $region24
      $region23: #{group_query_attn_forward.4} parent=15 // pred_region
        %p194 = scmp.lt.s32.totalorder %s16, 1
        %s195 = scalar_select %p194, %s16, 1
        %p196 = scmp.lt.s32.totalorder %s17, 1
        %s197 = scalar_select %p196, %s17, 1
        %p198 = scmp.lt.s32.totalorder %s19, 1
        %s199 = scalar_select %p198, %s19, 1
        %s200 = smul.addr %s197, 2
        %s201 = sadd.s32 %s199, %s200
        %s202 = smul.addr %s195, 4
        %s203 = sadd.s32 %s201, %s202
        %s204 = smul.addr %s203, 8
        %s205 = scalar_lea.vmem %s1, %s204
      $region24: #{group_query_attn_forward.4} parent=15 // pred_fallthru
        _
      // Predicated region
      $region25: #{group_query_attn_forward.4} parent=15 // pred_check
        %p206 = pneg %p119
      $region26: #{group_query_attn_forward.4} parent=15 // pred_check_branch
        %208 = sbr.rel (%p206) target = $region28
      $region27: #{group_query_attn_forward.4} parent=15 // pred_region
        %p209 = scmp.lt.s32.totalorder %s16, 1
        %s210 = scalar_select %p209, %s16, 1
        %p211 = scmp.lt.s32.totalorder %s17, 1
        %s212 = scalar_select %p211, %s17, 1
        %p213 = scmp.lt.s32.totalorder %s19, 1
        %s214 = scalar_select %p213, %s19, 1
        %s215 = smul.addr %s212, 2
        %s216 = sadd.s32 %s214, %s215
        %s217 = smul.addr %s210, 4
        %s218 = sadd.s32 %s216, %s217
        %s219 = smul.addr %s218, 8
        %s220 = scalar_lea.vmem %s2, %s219
      $region28: #{group_query_attn_forward.4} parent=15 // pred_fallthru
        _
    $region16: #{group_query_attn_forward.4} parent=5 // pred_fallthru
      _
    %p221 = scmp.le.s32.totalorder 1, %s9
    %p222 = scmp.lt.s32.totalorder %s9, 17
    %p223 = pnand %p221, %p222
    %p224 = pneg %p223
    // Predicated region
    $region29: #{group_query_attn_forward.4} parent=5 // pred_check
      _
    $region30: #{group_query_attn_forward.4} parent=5 // pred_check_branch
      %226 = sbr.rel (%p223) target = $region32
    $region31: #{group_query_attn_forward.4} parent=5 // pred_region
      %s227 = ssub.s32 %s9, 1
      %s228 = smul.u32 2, %s22
      %p229 = scmp.lt.s32.totalorder %s20, 1
      %s230 = scalar_select %p229, %s20, 1
      %p231 = scmp.lt.s32.totalorder %s21, 1
      %s232 = scalar_select %p231, %s21, 1
      %p233 = scmp.lt.s32.totalorder %s228, 3
      %s234 = scalar_select %p233, %s228, 3
      %s235 = smul.addr %s232, 4
      %s236 = sadd.s32 %s234, %s235
      %s237 = smul.addr %s230, 8
      %s238 = sadd.s32 %s236, %s237
      %s239 = smul.addr %s238, 8
      %s240 = scalar_lea.vmem %s0, %s239
      %p241 = pneg %p65
      %p242 = pneg %p62
      %p243 = scmp.lt.s32.totalorder %s20, 1
      %s244 = scalar_select %p243, %s20, 1
      %p245 = scmp.lt.s32.totalorder %s21, 1
      %s246 = scalar_select %p245, %s21, 1
      %p247 = scmp.lt.s32.totalorder %s23, 1
      %s248 = scalar_select %p247, %s23, 1
      %s249 = smul.addr %s246, 2
      %s250 = sadd.s32 %s248, %s249
      %s251 = smul.addr %s244, 4
      %s252 = sadd.s32 %s250, %s251
      %s253 = smul.addr %s252, 8
      %s254 = scalar_lea.vmem %s1, %s253
      %p255 = pneg %p95
      %p256 = pneg %p92
      %p257 = scmp.lt.s32.totalorder %s20, 1
      %s258 = scalar_select %p257, %s20, 1
      %p259 = scmp.lt.s32.totalorder %s21, 1
      %s260 = scalar_select %p259, %s21, 1
      %p261 = scmp.lt.s32.totalorder %s23, 1
      %s262 = scalar_select %p261, %s23, 1
      %s263 = smul.addr %s260, 2
      %s264 = sadd.s32 %s262, %s263
      %s265 = smul.addr %s258, 4
      %s266 = sadd.s32 %s264, %s265
      %s267 = smul.addr %s266, 8
      %s268 = scalar_lea.vmem %s2, %s267
      %p269 = pneg %p125
      %p270 = pneg %p122
      %p271 = pneg %p155
      %p272 = pneg %p152
      %s273 = smul.u32 2, %s22
      %p274 = scmp.lt.s32.totalorder %s20, 1
      %s275 = scalar_select %p274, %s20, 1
      %p276 = scmp.lt.s32.totalorder %s21, 1
      %s277 = scalar_select %p276, %s21, 1
      %p278 = scmp.lt.s32.totalorder %s273, 3
      %s279 = scalar_select %p278, %s273, 3
      %s280 = smul.addr %s277, 4
      %s281 = sadd.s32 %s279, %s280
      %s282 = smul.addr %s275, 8
      %s283 = sadd.s32 %s281, %s282
      %s284 = smul.addr %s283, 8
      %s285 = scalar_lea.vmem %s3, %s284
      %s286 = smul.u32 2, %s22
      %p287 = scmp.lt.s32.totalorder %s20, 1
      %s288 = scalar_select %p287, %s20, 1
      %p289 = scmp.lt.s32.totalorder %s21, 1
      %s290 = scalar_select %p289, %s21, 1
      %p291 = scmp.lt.s32.totalorder %s286, 3
      %s292 = scalar_select %p291, %s286, 3
      %s293 = smul.addr %s290, 4
      %s294 = sadd.s32 %s292, %s293
      %s295 = smul.addr %s288, 8
      %s296 = sadd.s32 %s294, %s295
      %s297 = smul.addr %s296, 8
      %s298 = scalar_lea.vmem %s0, %s297
      %s299 = smul.u32 2, %s22
      %p300 = scmp.lt.s32.totalorder %s20, 1
      %s301 = scalar_select %p300, %s20, 1
      %p302 = scmp.lt.s32.totalorder %s21, 1
      %s303 = scalar_select %p302, %s21, 1
      %p304 = scmp.lt.s32.totalorder %s23, 1
      %s305 = scalar_select %p304, %s23, 1
      %s306 = smul.addr %s303, 2
      %s307 = sadd.s32 %s305, %s306
      %s308 = smul.addr %s301, 4
      %s309 = sadd.s32 %s307, %s308
      %s310 = smul.addr %s309, 8
      %s311 = scalar_lea.vmem %s1, %s310
      %p312 = scmp.lt.s32.totalorder %s20, 1
      %s313 = scalar_select %p312, %s20, 1
      %p314 = scmp.lt.s32.totalorder %s21, 1
      %s315 = scalar_select %p314, %s21, 1
      %p316 = scmp.lt.s32.totalorder %s23, 1
      %s317 = scalar_select %p316, %s23, 1
      %s318 = smul.addr %s315, 2
      %s319 = sadd.s32 %s317, %s318
      %s320 = smul.addr %s313, 4
      %s321 = sadd.s32 %s319, %s320
      %s322 = smul.addr %s321, 8
      %s323 = scalar_lea.vmem %s2, %s322
      %s324 = smul.u32 2, %s22
      %p325 = scmp.lt.s32.totalorder %s20, 1
      %s326 = scalar_select %p325, %s20, 1
      %p327 = scmp.lt.s32.totalorder %s21, 1
      %s328 = scalar_select %p327, %s21, 1
      %p329 = scmp.lt.s32.totalorder %s324, 3
      %s330 = scalar_select %p329, %s324, 3
      %s331 = smul.addr %s328, 4
      %s332 = sadd.s32 %s330, %s331
      %s333 = smul.addr %s326, 8
      %s334 = sadd.s32 %s332, %s333
      %s335 = smul.addr %s334, 8
      %s336 = scalar_lea.vmem %s3, %s335
      %s337 = smul.u32 2, %s22
      %p338 = scmp.eq.s32.totalorder %s23, 0
      // Predicated region
      $region33: #{group_query_attn_forward.4} parent=31 // pred_check
        %p339 = pneg %p338
      $region34: #{group_query_attn_forward.4} parent=31 // pred_check_branch
        %341 = sbr.rel (%p339) target = $region36
      $region35: #{group_query_attn_forward.4} parent=31 // pred_region
        %vm342 = vcmask 7168
        %343 = vst.msk [vmem:[#allocation2] sm:$0xff] %vm342, -inf
        %344 = vst.msk [vmem:[#allocation2 + $0x8] sm:$0xff] %vm342, -inf
        %345 = vst.msk [vmem:[#allocation3] sm:$0xff] %vm342, 0.0
        %346 = vst.msk [vmem:[#allocation3 + $0x8] sm:$0xff] %vm342, 0.0
        %vm347 = vcmask 64512
        %348 = vst.msk [vmem:[#allocation4] sm:$0xff] %vm347, 0.0
        %349 = vst.msk [vmem:[#allocation4 + $0x8] sm:$0xff] %vm347, 0.0
      $region36: #{group_query_attn_forward.4} parent=31 // pred_fallthru
        _
      %v350 = vld [vmem:[%s298] sm:$0xff]
      %v351 = vld [vmem:[%s298 + $0x8] sm:$0xff]
      %v352 = vld [vmem:[%s311] sm:$0xff]
      %v353 = vld [vmem:[%s323] sm:$0xff]
      %vm354 = vcmask 64512
      %v356 = vsel %vm354, %v350, 0
      %v359 = vsel %vm354, %v351, 0
      %v362 = vsel %vm354, %v352, 0
      %364 = vmatprep.subr.mxu0 0.0
      %365 = vmatpush1.xpose.msra.mxu0 %v362
      %366 = vmatprep.subr.mxu0 0.0
      %367 = vmatpush1.xpose.msra.mxu0 0.0
      %368 = vmatprep.subr.mxu0 0.0
      %369 = vmatpush1.xpose.msra.mxu0 0.0
      %370 = vmatprep.subr.mxu0 0.0
      %371 = vmatpush1.xpose.msra.mxu0 0.0
      %372 = vmatprep.subr.mxu0 0.0
      %373 = vmatpush1.xpose.msra.mxu0 0.0
      %374 = vmatprep.subr.mxu0 0.0
      %375 = vmatpush1.xpose.msra.mxu0 0.0
      %376 = vmatprep.subr.mxu0 0.0
      %377 = vmatpush1.xpose.msra.mxu0 0.0
      %378 = vmatprep.subr.mxu0 0.0
      %379 = vmatpush1.xpose.msra.mxu0 0.0
      %380 = vmatprep.subr.mxu0 0.0
      %381 = vmatpush1.xpose.msra.mxu0 0.0
      %382 = vmatprep.subr.mxu0 0.0
      %383 = vmatpush1.xpose.msra.mxu0 0.0
      %384 = vmatprep.subr.mxu0 0.0
      %385 = vmatpush1.xpose.msra.mxu0 0.0
      %386 = vmatprep.subr.mxu0 0.0
      %387 = vmatpush1.xpose.msra.mxu0 0.0
      %388 = vmatprep.subr.mxu0 0.0
      %389 = vmatpush1.xpose.msra.mxu0 0.0
      %390 = vmatprep.subr.mxu0 0.0
      %391 = vmatpush1.xpose.msra.mxu0 0.0
      %392 = vmatprep.subr.mxu0 0.0
      %393 = vmatpush1.xpose.msra.mxu0 0.0
      %394 = vmatprep.subr.mxu0 0.0
      %395 = vmatpush1.xpose.msra.mxu0 0.0
      %396 = vmatprep.subr.mxu0 0.0
      %397 = vmatpush1.xpose.msra.mxu0 0.0
      %398 = vmatprep.subr.mxu0 0.0
      %399 = vmatpush1.xpose.msra.mxu0 0.0
      %400 = vmatprep.subr.mxu0 0.0
      %401 = vmatpush1.xpose.msra.mxu0 0.0
      %402 = vmatprep.subr.mxu0 0.0
      %403 = vmatpush1.xpose.msra.mxu0 0.0
      %404 = vmatprep.subr.mxu0 0.0
      %405 = vmatpush1.xpose.msra.mxu0 0.0
      %406 = vmatprep.subr.mxu0 0.0
      %407 = vmatpush1.xpose.msra.mxu0 0.0
      %408 = vmatprep.subr.mxu0 0.0
      %409 = vmatpush1.xpose.msra.mxu0 0.0
      %410 = vmatprep.subr.mxu0 0.0
      %411 = vmatpush1.xpose.msra.mxu0 0.0
      %412 = vmatprep.subr.mxu0 0.0
      %413 = vmatpush1.xpose.msra.mxu0 0.0
      %414 = vmatprep.subr.mxu0 0.0
      %415 = vmatpush1.xpose.msra.mxu0 0.0
      %416 = vmatprep.subr.mxu0 0.0
      %417 = vmatpush1.xpose.msra.mxu0 0.0
      %418 = vmatprep.subr.mxu0 0.0
      %419 = vmatpush1.xpose.msra.mxu0 0.0
      %420 = vmatprep.subr.mxu0 0.0
      %421 = vmatpush1.xpose.msra.mxu0 0.0
      %422 = vmatprep.subr.mxu0 0.0
      %423 = vmatpush1.xpose.msra.mxu0 0.0
      %424 = vmatprep.subr.mxu0 0.0
      %425 = vmatpush1.xpose.msra.mxu0 0.0
      %426 = vmatprep.subr.mxu0 0.0
      %427 = vmatpush1.xpose.msra.mxu0 0.0
      %428 = vmatprep.mubr.f32.mxu0 0.0
      %429 = vmatmul.mubr.f32.gmra.mrb[0].mxu0 %v356
      %v430 = vpop.f32.mrb[0].mxu0
      %v431 = vadd.f32 0.0, %v430
      %v432 = vpop.f32.mrb[0].mxu0
      %433 = vmatprep.mubr.f32.mxu0 0.0
      %434 = vmatmul.mubr.f32.gmra.mrb[0].mxu0 %v359
      %v435 = vpop.f32.mrb[0].mxu0
      %v436 = vadd.f32 0.0, %v435
      %v437 = vpop.f32.mrb[0].mxu0
      %438 = vdwg.mxu0
      %v439 = vld [vmem:[#allocation2] sm:$0xff]
      %v440 = vld [vmem:[#allocation2 + $0x8] sm:$0xff]
      %v441 = vsel %vm354, %v431, -inf
      %442 = vmax.xlane.f32.xlu0 %v441
      %v443 = vpop.xlane.xlu0 %442
      %v444 = vsel %vm354, %v436, -inf
      %445 = vmax.xlane.f32.xlu0 %v444
      %v446 = vpop.xlane.xlu0 %445
      %v447 = vmax.f32 %v439, %v443
      %v448 = vmax.f32 %v440, %v446
      %v449 = vsub.f32 %v439, %v447
      %v450 = vsub.f32 %v440, %v448
      %v451 = vmul.f32 %v449, 1.442695
      %v452 = vpow.pop %v451
      %v453 = vmul.f32 %v450, 1.442695
      %v454 = vpow.pop %v453
      %456 = vset.pattern.permute.xlu0 0
      %457 = vperm.xlu0 %456, %v447
      %v458 = vpop.permute.xlu0 %457
      %461 = vset.pattern.permute.xlu0 0
      %462 = vperm.xlu0 %461, %v448
      %v463 = vpop.permute.xlu0 %462
      %v465 = vsub.f32 %v431, %v458
      %v466 = vsub.f32 %v436, %v463
      %v467 = vmul.f32 %v465, 1.442695
      %v468 = vpow.pop %v467
      %v469 = vmul.f32 %v466, 1.442695
      %v470 = vpow.pop %v469
      %v471 = vld [vmem:[#allocation3] sm:$0xff]
      %v472 = vld [vmem:[#allocation3 + $0x8] sm:$0xff]
      %v473 = vmul.f32 %v452, %v471
      %v474 = vmul.f32 %v454, %v472
      %v475 = vsel %vm354, %v468, 0.0
      %476 = vadd.xlane.f32.xlu0 %v475
      %v477 = vpop.xlane.xlu0 %476
      %v478 = vsel %vm354, %v470, 0.0
      %479 = vadd.xlane.f32.xlu0 %v478
      %v480 = vpop.xlane.xlu0 %479
      %v481 = vadd.f32 %v473, %v477
      %v482 = vadd.f32 %v474, %v480
      %vm483 = vcmask 7168
      %484 = vst.msk [vmem:[#allocation3] sm:$0xff] %vm483, %v481
      %485 = vst.msk [vmem:[#allocation3 + $0x8] sm:$0xff] %vm483, %v482
      %v487 = vsel %vm354, %v468, 0
      %v490 = vsel %vm354, %v470, 0
      %492 = vmatprep.subr.mxu0 0.0
      %493 = vmatpush1.msra.mxu0 %v353
      %494 = vmatprep.subr.mxu0 0.0
      %495 = vmatpush1.msra.mxu0 0.0
      %496 = vmatprep.subr.mxu0 0.0
      %497 = vmatpush1.msra.mxu0 0.0
      %498 = vmatprep.subr.mxu0 0.0
      %499 = vmatpush1.msra.mxu0 0.0
      %500 = vmatprep.subr.mxu0 0.0
      %501 = vmatpush1.msra.mxu0 0.0
      %502 = vmatprep.subr.mxu0 0.0
      %503 = vmatpush1.msra.mxu0 0.0
      %504 = vmatprep.subr.mxu0 0.0
      %505 = vmatpush1.msra.mxu0 0.0
      %506 = vmatprep.subr.mxu0 0.0
      %507 = vmatpush1.msra.mxu0 0.0
      %508 = vmatprep.subr.mxu0 0.0
      %509 = vmatpush1.msra.mxu0 0.0
      %510 = vmatprep.subr.mxu0 0.0
      %511 = vmatpush1.msra.mxu0 0.0
      %512 = vmatprep.subr.mxu0 0.0
      %513 = vmatpush1.msra.mxu0 0.0
      %514 = vmatprep.subr.mxu0 0.0
      %515 = vmatpush1.msra.mxu0 0.0
      %516 = vmatprep.subr.mxu0 0.0
      %517 = vmatpush1.msra.mxu0 0.0
      %518 = vmatprep.subr.mxu0 0.0
      %519 = vmatpush1.msra.mxu0 0.0
      %520 = vmatprep.subr.mxu0 0.0
      %521 = vmatpush1.msra.mxu0 0.0
      %522 = vmatprep.subr.mxu0 0.0
      %523 = vmatpush1.msra.mxu0 0.0
      %524 = vmatprep.subr.mxu0 0.0
      %525 = vmatpush1.msra.mxu0 0.0
      %526 = vmatprep.subr.mxu0 0.0
      %527 = vmatpush1.msra.mxu0 0.0
      %528 = vmatprep.subr.mxu0 0.0
      %529 = vmatpush1.msra.mxu0 0.0
      %530 = vmatprep.subr.mxu0 0.0
      %531 = vmatpush1.msra.mxu0 0.0
      %532 = vmatprep.subr.mxu0 0.0
      %533 = vmatpush1.msra.mxu0 0.0
      %534 = vmatprep.subr.mxu0 0.0
      %535 = vmatpush1.msra.mxu0 0.0
      %536 = vmatprep.subr.mxu0 0.0
      %537 = vmatpush1.msra.mxu0 0.0
      %538 = vmatprep.subr.mxu0 0.0
      %539 = vmatpush1.msra.mxu0 0.0
      %540 = vmatprep.subr.mxu0 0.0
      %541 = vmatpush1.msra.mxu0 0.0
      %542 = vmatprep.subr.mxu0 0.0
      %543 = vmatpush1.msra.mxu0 0.0
      %544 = vmatprep.subr.mxu0 0.0
      %545 = vmatpush1.msra.mxu0 0.0
      %546 = vmatprep.subr.mxu0 0.0
      %547 = vmatpush1.msra.mxu0 0.0
      %548 = vmatprep.subr.mxu0 0.0
      %549 = vmatpush1.msra.mxu0 0.0
      %550 = vmatprep.subr.mxu0 0.0
      %551 = vmatpush1.msra.mxu0 0.0
      %552 = vmatprep.subr.mxu0 0.0
      %553 = vmatpush1.msra.mxu0 0.0
      %554 = vmatprep.subr.mxu0 0.0
      %555 = vmatpush1.msra.mxu0 0.0
      %556 = vmatprep.mubr.f32.mxu0 0.0
      %557 = vmatmul.mubr.f32.gmra.mrb[0].mxu0 %v487
      %v558 = vpop.f32.mrb[0].mxu0
      %v559 = vadd.f32 0.0, %v558
      %v560 = vpop.f32.mrb[0].mxu0
      %561 = vmatprep.mubr.f32.mxu0 0.0
      %562 = vmatmul.mubr.f32.gmra.mrb[0].mxu0 %v490
      %v563 = vpop.f32.mrb[0].mxu0
      %v564 = vadd.f32 0.0, %v563
      %v565 = vpop.f32.mrb[0].mxu0
      %566 = vdwg.mxu0
      %v567 = vld [vmem:[#allocation4] sm:$0xff]
      %v568 = vld [vmem:[#allocation4 + $0x8] sm:$0xff]
      %570 = vset.pattern.permute.xlu0 0
      %571 = vperm.xlu0 %570, %v452
      %v572 = vpop.permute.xlu0 %571
      %575 = vset.pattern.permute.xlu0 0
      %576 = vperm.xlu0 %575, %v454
      %v577 = vpop.permute.xlu0 %576
      %v579 = vmul.f32 %v572, %v567
      %v580 = vmul.f32 %v577, %v568
      %v581 = vadd.f32 %v579, %v559
      %v582 = vadd.f32 %v580, %v564
      %583 = vst.msk [vmem:[#allocation4] sm:$0xff] %vm354, %v581
      %584 = vst.msk [vmem:[#allocation4 + $0x8] sm:$0xff] %vm354, %v582
      %585 = vst.msk [vmem:[#allocation2] sm:$0xff] %vm483, %v447
      %586 = vst.msk [vmem:[#allocation2 + $0x8] sm:$0xff] %vm483, %v448
      %p587 = scmp.eq.s32.totalorder %s23, 1
      // Predicated region
      $region37: #{group_query_attn_forward.4} parent=31 // pred_check
        %p588 = pneg %p587
      $region38: #{group_query_attn_forward.4} parent=31 // pred_check_branch
        %590 = sbr.rel (%p588) target = $region40
      $region39: #{group_query_attn_forward.4} parent=31 // pred_region
        %v591 = vld [vmem:[#allocation3] sm:$0xff]
        %v592 = vld [vmem:[#allocation3 + $0x8] sm:$0xff]
        %v593 = vrcp.pop %v591
        %v594 = vrcp.pop %v592
        %v595 = vld [vmem:[#allocation4] sm:$0xff]
        %v596 = vld [vmem:[#allocation4 + $0x8] sm:$0xff]
        %598 = vset.pattern.permute.xlu0 0
        %599 = vperm.xlu0 %598, %v593
        %v600 = vpop.permute.xlu0 %599
        %603 = vset.pattern.permute.xlu0 0
        %604 = vperm.xlu0 %603, %v594
        %v605 = vpop.permute.xlu0 %604
        %v607 = vmul.f32 %v595, %v600
        %v608 = vmul.f32 %v596, %v605
        %609 = vst.msk [vmem:[%s336] sm:$0xff] %vm354, %v607
        %610 = vst.msk [vmem:[%s336 + $0x8] sm:$0xff] %vm354, %v608
      $region40: #{group_query_attn_forward.4} parent=31 // pred_fallthru
        _
      %s611 = smul.u32 2, %s22
      %p612 = scmp.lt.s32.totalorder %s20, 1
      %s613 = scalar_select %p612, %s20, 1
      %p614 = scmp.lt.s32.totalorder %s21, 1
      %s615 = scalar_select %p614, %s21, 1
      %p616 = scmp.lt.s32.totalorder %s611, 3
      %s617 = scalar_select %p616, %s611, 3
      %s618 = smul.addr %s615, 4
      %s619 = sadd.s32 %s617, %s618
      %s620 = smul.addr %s613, 8
      %s621 = sadd.s32 %s619, %s620
      %s622 = smul.addr %s621, 8
      %s623 = scalar_lea.vmem %s3, %s622
      // Predicated region
      $region41: #{group_query_attn_forward.4} parent=31 // pred_check
        %p624 = pneg %p152
      $region42: #{group_query_attn_forward.4} parent=31 // pred_check_branch
        %626 = sbr.rel (%p624) target = $region44
      $region43: #{group_query_attn_forward.4} parent=31 // pred_region
        %s627 = smul.u32 2, %s22
      $region44: #{group_query_attn_forward.4} parent=31 // pred_fallthru
        _
    $region32: #{group_query_attn_forward.4} parent=5 // pred_fallthru
      _
    %p628 = scmp.le.s32.totalorder 2, %s9
    // Predicated region
    $region45: #{group_query_attn_forward.4} parent=5 // pred_check
      %p629 = pneg %p628
    $region46: #{group_query_attn_forward.4} parent=5 // pred_check_branch
      %631 = sbr.rel (%p629) target = $region48
    $region47: #{group_query_attn_forward.4} parent=5 // pred_region
      %s632 = ssub.s32 %s9, 2
      // Predicated region
      $region49: #{group_query_attn_forward.4} parent=47 // pred_check
        %p633 = pneg %p158
      $region50: #{group_query_attn_forward.4} parent=47 // pred_check_branch
        %635 = sbr.rel (%p633) target = $region52
      $region51: #{group_query_attn_forward.4} parent=47 // pred_region
        %s636 = smul.u32 2, %s26
        %p637 = scmp.lt.s32.totalorder %s24, 1
        %s638 = scalar_select %p637, %s24, 1
        %p639 = scmp.lt.s32.totalorder %s25, 1
        %s640 = scalar_select %p639, %s25, 1
        %p641 = scmp.lt.s32.totalorder %s636, 3
        %s642 = scalar_select %p641, %s636, 3
        %s643 = smul.addr %s640, 4
        %s644 = sadd.s32 %s642, %s643
        %s645 = smul.addr %s638, 8
        %s646 = sadd.s32 %s644, %s645
        %s647 = smul.addr %s646, 8
        %s648 = scalar_lea.vmem %s3, %s647
      $region52: #{group_query_attn_forward.4} parent=47 // pred_fallthru
        _
    $region48: #{group_query_attn_forward.4} parent=5 // pred_fallthru
      _
  $region6: #{group_query_attn_forward.4} parent=0 // loop_footer
    %s13 = sadd.s32 1, %s9
  $region7: #{group_query_attn_forward.4} parent=0 // loop_footer_branch
    %8 = sbr.rel target = $region3
  $region8: #{group_query_attn_forward.4} parent=0 // loop_exit
    _

</llo_original>
